<compile_context>
chip_gen: v7x
topology: tpu7x:2x2x1
jax: 0.10.0
libtpu: 0.0.40
codegen_flags: <defaults>
</compile_context>

<pallas_src>
import functools

import jax
import jax.numpy as jnp
from jax.experimental import pallas as pl
from jax.experimental.pallas import tpu as pltpu


def _layer_norm(x, gamma, beta, eps=1e-5):
    mu = jnp.mean(x, axis=-1, keepdims=True)
    xc = x - mu
    var = jnp.mean(xc * xc, axis=-1, keepdims=True)
    return xc * jax.lax.rsqrt(var + eps) * gamma + beta


def _transformer_layer_kernel(
    # inputs
    xq_ref, xkv_ref,
    ln1_g_ref, ln1_b_ref,
    wq_ref, bq_ref, wk_ref, bk_ref, wv_ref, bv_ref,
    wo_ref, bo_ref,
    ln2_g_ref, ln2_b_ref,
    w1_ref, b1_ref, w2_ref, b2_ref,
    # outputs
    o_ref,
    # scratch
    q_s, m_s, l_s, acc_s,
    *, num_heads, cdtype, approx_recip,
):
    ki = pl.program_id(2)
    nk = pl.num_programs(2)
    H = num_heads
    hd = wq_ref.shape[-1]
    scale = 1.0 / (hd ** 0.5)

    # ---- per-(b, q-tile) init: project Q once, reset online-softmax state ----
    @pl.when(ki == 0)
    def _init():
        xq = xq_ref[0].astype(jnp.float32)                         # (TQ, D)
        xn = _layer_norm(xq, ln1_g_ref[...], ln1_b_ref[...]).astype(cdtype)
        for h in range(H):
            qh = jnp.dot(xn, wq_ref[h],
                         preferred_element_type=jnp.float32) + bq_ref[h]
            q_s[h] = (qh * scale).astype(q_s.dtype)                # pre-scaled
        m_s[...] = jnp.full(m_s.shape, -jnp.inf, dtype=m_s.dtype)
        l_s[...] = jnp.zeros(l_s.shape, dtype=l_s.dtype)
        acc_s[...] = jnp.zeros(acc_s.shape, dtype=acc_s.dtype)

    # ---- this KV tile: project K/V, online-softmax update (per head) --------
    xkv = xkv_ref[0].astype(jnp.float32)                           # (TK, D)
    xn_kv = _layer_norm(xkv, ln1_g_ref[...], ln1_b_ref[...]).astype(cdtype)
    for h in range(H):
        kh = (jnp.dot(xn_kv, wk_ref[h], preferred_element_type=jnp.float32)
              + bk_ref[h]).astype(cdtype)                          # (TK, hd)
        vh = (jnp.dot(xn_kv, wv_ref[h], preferred_element_type=jnp.float32)
              + bv_ref[h]).astype(cdtype)                          # (TK, hd)
        qh = q_s[h]                                                # (TQ, hd)
        # scores = q @ k^T without materializing the transpose
        s = jax.lax.dot_general(qh, kh, (((1,), (1,)), ((), ())),
                                preferred_element_type=jnp.float32)  # (TQ, TK)
        m_prev = m_s[h]                                            # (TQ, 1)
        m_new = jnp.maximum(m_prev, jnp.max(s, axis=-1, keepdims=True))
        alpha = jnp.exp(m_prev - m_new)
        p = jnp.exp(s - m_new)
        l_s[h] = alpha * l_s[h] + jnp.sum(p, axis=-1, keepdims=True)
        acc_s[h] = alpha * acc_s[h] + jnp.dot(
            p.astype(cdtype), vh, preferred_element_type=jnp.float32)
        m_s[h] = m_new

    # ---- last KV tile: finish attention, output proj, residual, FFN ---------
    @pl.when(ki == nk - 1)
    def _finalize():
        xq = xq_ref[0].astype(jnp.float32)                         # (TQ, D)
        attn = jnp.zeros_like(xq)                                  # (TQ, D) f32
        for h in range(H):
            inv_l = pl.reciprocal(l_s[h], approx=approx_recip)     # (TQ, 1)
            oh = (acc_s[h] * inv_l).astype(cdtype)                 # (TQ, hd)
            # Wo fused per head: no lane concat of head outputs.
            attn = attn + jnp.dot(oh, wo_ref[h],
                                  preferred_element_type=jnp.float32)
        x1 = xq + attn + bo_ref[...]

        xn2 = _layer_norm(x1, ln2_g_ref[...], ln2_b_ref[...]).astype(cdtype)
        h1 = jnp.dot(xn2, w1_ref[...],
                     preferred_element_type=jnp.float32) + b1_ref[...]
        h1 = h1 * jax.nn.sigmoid(h1)                               # SiLU (f32)
        h2 = jnp.dot(h1.astype(cdtype), w2_ref[...],
                     preferred_element_type=jnp.float32) + b2_ref[...]
        o_ref[0] = (x1 + h2).astype(o_ref.dtype)


def transformer_layer(x, params, *, num_heads, compute_dtype=jnp.bfloat16,
                      block_q=128, block_k=128):
    """Fused transformer layer. x: (B, N, D) f32. Weights stored (in, out)."""
    B, N, D = x.shape
    H = num_heads
    assert D % H == 0, "embed_dim must be divisible by num_heads"
    hd = D // H
    M = params["w1"].shape[1]

    tq = min(block_q, N)
    tk = min(block_k, N)
    assert N % tq == 0 and N % tk == 0, "N must be divisible by the tile sizes"
    assert (tq == N or tq % 8 == 0) and (tk == N or tk % 8 == 0)

    f32 = jnp.float32
    cdt = compute_dtype

    # ---- host-side repack: per-head weight slabs, lane-dense biases ---------
    wqkv = params["wqkv"]                              # (D, 3D)
    wq = wqkv[:, 0 * D:1 * D].reshape(D, H, hd).transpose(1, 0, 2).astype(cdt)
    wk = wqkv[:, 1 * D:2 * D].reshape(D, H, hd).transpose(1, 0, 2).astype(cdt)
    wv = wqkv[:, 2 * D:3 * D].reshape(D, H, hd).transpose(1, 0, 2).astype(cdt)
    bqkv = params["bqkv"]
    bq = bqkv[0 * D:1 * D].reshape(H, 1, hd).astype(f32)
    bk = bqkv[1 * D:2 * D].reshape(H, 1, hd).astype(f32)
    bv = bqkv[2 * D:3 * D].reshape(H, 1, hd).astype(f32)
    wo = params["wo"].reshape(H, hd, D).astype(cdt)
    bo = params["bo"].reshape(1, D).astype(f32)
    w1 = params["w1"].astype(cdt)
    b1 = params["b1"].reshape(1, M).astype(f32)
    w2 = params["w2"].astype(cdt)
    b2 = params["b2"].reshape(1, D).astype(f32)
    ln1_g = params["ln1_g"].reshape(1, D).astype(f32)
    ln1_b = params["ln1_b"].reshape(1, D).astype(f32)
    ln2_g = params["ln2_g"].reshape(1, D).astype(f32)
    ln2_b = params["ln2_b"].reshape(1, D).astype(f32)

    grid = (B, N // tq, N // tk)

    def const(shape):
        return pl.BlockSpec(shape, lambda b, qi, ki: tuple(0 for _ in shape))

    kernel = functools.partial(
        _transformer_layer_kernel,
        num_heads=H, cdtype=cdt,
        approx_recip=(cdt != jnp.float32))

    # Advisory cost estimate (helps XLA schedule around the custom call).
    flops = 8 * B * N * D * D + 4 * B * N * N * D + 4 * B * N * D * M
    transcendentals = B * H * N * N + B * N * M
    wbytes = jnp.dtype(cdt).itemsize
    bytes_accessed = (3 * B * N * D * 4
                      + (4 * D * D + 2 * D * M) * wbytes
                      + (6 * D + M + 2 * D) * 4)

    return pl.pallas_call(
        kernel,
        out_shape=jax.ShapeDtypeStruct((B, N, D), x.dtype),
        grid_spec=pltpu.PrefetchScalarGridSpec(
            num_scalar_prefetch=0,
            grid=grid,
            in_specs=[
                pl.BlockSpec((1, tq, D), lambda b, qi, ki: (b, qi, 0)),  # x (q tile)
                pl.BlockSpec((1, tk, D), lambda b, qi, ki: (b, ki, 0)),  # x (kv tile)
                const((1, D)), const((1, D)),                # ln1 gamma/beta
                const((H, D, hd)), const((H, 1, hd)),        # Wq, bq
                const((H, D, hd)), const((H, 1, hd)),        # Wk, bk
                const((H, D, hd)), const((H, 1, hd)),        # Wv, bv
                const((H, hd, D)), const((1, D)),            # Wo (per head), bo
                const((1, D)), const((1, D)),                # ln2 gamma/beta
                const((D, M)), const((1, M)),                # W1, b1
                const((M, D)), const((1, D)),                # W2, b2
            ],
            out_specs=pl.BlockSpec((1, tq, D), lambda b, qi, ki: (b, qi, 0)),
            scratch_shapes=[
                pltpu.VMEM((H, tq, hd), cdt),          # cached, pre-scaled Q
                pltpu.VMEM((H, tq, 1), jnp.float32),   # running max  m
                pltpu.VMEM((H, tq, 1), jnp.float32),   # running sum  l
                pltpu.VMEM((H, tq, hd), jnp.float32),  # running acc  (P @ V)
            ],
        ),
        compiler_params=pltpu.CompilerParams(
            dimension_semantics=("parallel", "parallel", "arbitrary"),
            vmem_limit_bytes=48 * 1024 * 1024,
        ),
        cost_estimate=pl.CostEstimate(
            flops=flops,
            transcendentals=transcendentals,
            bytes_accessed=bytes_accessed,
        ),
    )(
        x, x,
        ln1_g, ln1_b,
        wq, bq, wk, bk, wv, bv,
        wo, bo,
        ln2_g, ln2_b,
        w1, b1, w2, b2,
    )


def transformer_layer_ref(x, params, *, num_heads):
    """Pure-JAX (f32) reference of the same forward pass."""
    B, N, D = x.shape
    hd = D // num_heads
    xn = _layer_norm(x, params["ln1_g"], params["ln1_b"])
    qkv = xn @ params["wqkv"] + params["bqkv"]
    q, k, v = jnp.split(qkv, 3, axis=-1)

    def heads(t):  # (B, N, D) -> (B, H, N, hd)
        return t.reshape(B, N, num_heads, hd).transpose(0, 2, 1, 3)

    qh, kh, vh = heads(q), heads(k), heads(v)
    s = jnp.einsum("bhqd,bhkd->bhqk", qh, kh) / (hd ** 0.5)
    p = jax.nn.softmax(s, axis=-1)
    attn = jnp.einsum("bhqk,bhkd->bhqd", p, vh)
    attn = attn.transpose(0, 2, 1, 3).reshape(B, N, D)
    x = x + attn @ params["wo"] + params["bo"]

    xn2 = _layer_norm(x, params["ln2_g"], params["ln2_b"])
    h1 = xn2 @ params["w1"] + params["b1"]
    h1 = jax.nn.silu(h1)
    return x + h1 @ params["w2"] + params["b2"]


def init_params(key, embed_dim, mid_dim):
    D, M = embed_dim, mid_dim
    ks = jax.random.split(key, 6)
    std = 0.02
    return {
        "ln1_g": jnp.ones((D,), jnp.float32),
        "ln1_b": jnp.zeros((D,), jnp.float32),
        "wqkv": std * jax.random.normal(ks[0], (D, 3 * D), jnp.float32),
        "bqkv": jnp.zeros((3 * D,), jnp.float32),
        "wo": std * jax.random.normal(ks[1], (D, D), jnp.float32),
        "bo": jnp.zeros((D,), jnp.float32),
        "ln2_g": jnp.ones((D,), jnp.float32),
        "ln2_b": jnp.zeros((D,), jnp.float32),
        "w1": std * jax.random.normal(ks[2], (D, M), jnp.float32),
        "b1": jnp.zeros((M,), jnp.float32),
        "w2": std * jax.random.normal(ks[3], (M, D), jnp.float32),
        "b2": jnp.zeros((D,), jnp.float32),
    }


if __name__ == "__main__":
    key = jax.random.PRNGKey(0)
    kx, kp = jax.random.split(key)

    # Shared small config: hidden=32, heads=2, mid_dim=64.
    D, H, M = 32, 2, 64
    params = init_params(kp, D, M)

    # --- Test 1: tiny (B=2, N=8), single KV tile, f32 MXU path (tight) ------
    B, N = 2, 8
    x = jax.random.normal(kx, (B, N, D), jnp.float32)
    out = jax.block_until_ready(
        transformer_layer(x, params, num_heads=H, compute_dtype=jnp.float32))
    ref = transformer_layer_ref(x, params, num_heads=H)
    assert out.shape == (B, N, D)
    assert jnp.allclose(out, ref, atol=2e-3, rtol=2e-3), "f32 single-tile mismatch"

    # --- Test 2: N=32 with block_q=16, block_k=8 -> grid (2,2,4): exercises
    #             the multi-tile online-softmax (flash) path, f32 MXU. -------
    B2, N2 = 2, 32
    x2 = jax.random.normal(jax.random.PRNGKey(1), (B2, N2, D), jnp.float32)
    out2 = jax.block_until_ready(
        transformer_layer(x2, params, num_heads=H, compute_dtype=jnp.float32,
                          block_q=16, block_k=8))
    ref2 = transformer_layer_ref(x2, params, num_heads=H)
    assert jnp.allclose(out2, ref2, atol=2e-3, rtol=2e-3), "f32 flash mismatch"

    # --- Test 3: same shapes, bf16 MXU operands (the perf configuration) ----
    out3 = jax.block_until_ready(
        transformer_layer(x2, params, num_heads=H, compute_dtype=jnp.bfloat16,
                          block_q=16, block_k=8))
    assert jnp.allclose(out3, ref2, atol=5e-2, rtol=5e-2), "bf16 flash mismatch"

    print("KERNEL_OK")
</pallas_src>

<mosaic_0001>
module attributes {stable_mosaic.version = 11 : i64} {
  func.func @_transformer_layer_kernel(%arg0: i32, %arg1: i32, %arg2: i32, %arg3: memref<1x8x32xf32, #tpu.memory_space<vmem>>, %arg4: memref<1x8x32xf32, #tpu.memory_space<vmem>>, %arg5: memref<1x32xf32, #tpu.memory_space<vmem>>, %arg6: memref<1x32xf32, #tpu.memory_space<vmem>>, %arg7: memref<2x32x16xf32, #tpu.memory_space<vmem>>, %arg8: memref<2x1x16xf32, #tpu.memory_space<vmem>>, %arg9: memref<2x32x16xf32, #tpu.memory_space<vmem>>, %arg10: memref<2x1x16xf32, #tpu.memory_space<vmem>>, %arg11: memref<2x32x16xf32, #tpu.memory_space<vmem>>, %arg12: memref<2x1x16xf32, #tpu.memory_space<vmem>>, %arg13: memref<2x16x32xf32, #tpu.memory_space<vmem>>, %arg14: memref<1x32xf32, #tpu.memory_space<vmem>>, %arg15: memref<1x32xf32, #tpu.memory_space<vmem>>, %arg16: memref<1x32xf32, #tpu.memory_space<vmem>>, %arg17: memref<32x64xf32, #tpu.memory_space<vmem>>, %arg18: memref<1x64xf32, #tpu.memory_space<vmem>>, %arg19: memref<64x32xf32, #tpu.memory_space<vmem>>, %arg20: memref<1x32xf32, #tpu.memory_space<vmem>>, %arg21: memref<1x8x32xf32, #tpu.memory_space<vmem>>, %arg22: memref<2x8x16xf32, #tpu.memory_space<vmem>>, %arg23: memref<2x8x1xf32, #tpu.memory_space<vmem>>, %arg24: memref<2x8x1xf32, #tpu.memory_space<vmem>>, %arg25: memref<2x8x16xf32, #tpu.memory_space<vmem>>) attributes {dimension_semantics = [#tpu.dimension_semantics<parallel>, #tpu.dimension_semantics<parallel>, #tpu.dimension_semantics<arbitrary>], iteration_bounds = array<i64: 2, 1, 1>, scalar_prefetch = 0 : i64, scratch_operands = 4 : i64, tpu.core_type = #tpu.core_type<tc>, window_params = [{transform_indices = @transform_0, window_bounds = array<i64: 1, 8, 32>}, {transform_indices = @transform_1, window_bounds = array<i64: 1, 8, 32>}, {pipeline_mode = #tpu.pipeline_mode<synchronous>, transform_indices = @transform_2, window_bounds = array<i64: 1, 32>}, {pipeline_mode = #tpu.pipeline_mode<synchronous>, transform_indices = @transform_3, window_bounds = array<i64: 1, 32>}, {pipeline_mode = #tpu.pipeline_mode<synchronous>, transform_indices = @transform_4, window_bounds = array<i64: 2, 32, 16>}, {pipeline_mode = #tpu.pipeline_mode<synchronous>, transform_indices = @transform_5, window_bounds = array<i64: 2, 1, 16>}, {pipeline_mode = #tpu.pipeline_mode<synchronous>, transform_indices = @transform_6, window_bounds = array<i64: 2, 32, 16>}, {pipeline_mode = #tpu.pipeline_mode<synchronous>, transform_indices = @transform_7, window_bounds = array<i64: 2, 1, 16>}, {pipeline_mode = #tpu.pipeline_mode<synchronous>, transform_indices = @transform_8, window_bounds = array<i64: 2, 32, 16>}, {pipeline_mode = #tpu.pipeline_mode<synchronous>, transform_indices = @transform_9, window_bounds = array<i64: 2, 1, 16>}, {pipeline_mode = #tpu.pipeline_mode<synchronous>, transform_indices = @transform_10, window_bounds = array<i64: 2, 16, 32>}, {pipeline_mode = #tpu.pipeline_mode<synchronous>, transform_indices = @transform_11, window_bounds = array<i64: 1, 32>}, {pipeline_mode = #tpu.pipeline_mode<synchronous>, transform_indices = @transform_12, window_bounds = array<i64: 1, 32>}, {pipeline_mode = #tpu.pipeline_mode<synchronous>, transform_indices = @transform_13, window_bounds = array<i64: 1, 32>}, {pipeline_mode = #tpu.pipeline_mode<synchronous>, transform_indices = @transform_14, window_bounds = array<i64: 32, 64>}, {pipeline_mode = #tpu.pipeline_mode<synchronous>, transform_indices = @transform_15, window_bounds = array<i64: 1, 64>}, {pipeline_mode = #tpu.pipeline_mode<synchronous>, transform_indices = @transform_16, window_bounds = array<i64: 64, 32>}, {pipeline_mode = #tpu.pipeline_mode<synchronous>, transform_indices = @transform_17, window_bounds = array<i64: 1, 32>}, {transform_indices = @transform_18, window_bounds = array<i64: 1, 8, 32>}]} {
    %c0_i32 = arith.constant 0 : i32
    %0 = arith.cmpi eq, %arg2, %c0_i32 : i32
    %1 = arith.extui %0 : i1 to i32
    %c0_i32_0 = arith.constant 0 : i32
    %2 = arith.cmpi ne, %1, %c0_i32_0 : i32
    scf.if %2 {
      %c0_90 = arith.constant 0 : index
      %c0_91 = arith.constant 0 : index
      %c0_92 = arith.constant 0 : index
      %126 = vector.load %arg3[%c0_90, %c0_91, %c0_92] : memref<1x8x32xf32, #tpu.memory_space<vmem>>, vector<1x8x32xf32>
      %127 = vector.shape_cast %126 : vector<1x8x32xf32> to vector<8x32xf32>
      %c0_93 = arith.constant 0 : index
      %c0_94 = arith.constant 0 : index
      %128 = vector.load %arg5[%c0_93, %c0_94] : memref<1x32xf32, #tpu.memory_space<vmem>>, vector<1x32xf32>
      %c0_95 = arith.constant 0 : index
      %c0_96 = arith.constant 0 : index
      %129 = vector.load %arg6[%c0_95, %c0_96] : memref<1x32xf32, #tpu.memory_space<vmem>>, vector<1x32xf32>
      %cst_97 = arith.constant dense<0.000000e+00> : vector<8xf32>
      %130 = vector.multi_reduction <add>, %127, %cst_97 [1] : vector<8x32xf32> to vector<8xf32>
      %131 = vector.shape_cast %130 : vector<8xf32> to vector<8x1xf32>
      %cst_98 = arith.constant 3.200000e+01 : f32
      %132 = vector.broadcast %cst_98 : f32 to vector<8x1xf32>
      %133 = arith.divf %131, %132 : vector<8x1xf32>
      %134 = vector.broadcast %133 : vector<8x1xf32> to vector<8x32xf32>
      %135 = arith.subf %127, %134 : vector<8x32xf32>
      %136 = arith.mulf %135, %135 : vector<8x32xf32>
      %cst_99 = arith.constant dense<0.000000e+00> : vector<8xf32>
      %137 = vector.multi_reduction <add>, %136, %cst_99 [1] : vector<8x32xf32> to vector<8xf32>
      %138 = vector.shape_cast %137 : vector<8xf32> to vector<8x1xf32>
      %cst_100 = arith.constant 3.200000e+01 : f32
      %139 = vector.broadcast %cst_100 : f32 to vector<8x1xf32>
      %140 = arith.divf %138, %139 : vector<8x1xf32>
      %cst_101 = arith.constant 9.99999974E-6 : f32
      %141 = vector.broadcast %cst_101 : f32 to vector<8x1xf32>
      %142 = arith.addf %140, %141 : vector<8x1xf32>
      %143 = math.rsqrt %142 : vector<8x1xf32>
      %144 = vector.broadcast %143 : vector<8x1xf32> to vector<8x32xf32>
      %145 = arith.mulf %135, %144 : vector<8x32xf32>
      %146 = vector.broadcast %128 : vector<1x32xf32> to vector<8x32xf32>
      %147 = arith.mulf %145, %146 : vector<8x32xf32>
      %148 = vector.broadcast %129 : vector<1x32xf32> to vector<8x32xf32>
      %149 = arith.addf %147, %148 : vector<8x32xf32>
      %c0_102 = arith.constant 0 : index
      %c0_103 = arith.constant 0 : index
      %c0_104 = arith.constant 0 : index
      %150 = vector.load %arg7[%c0_102, %c0_103, %c0_104] : memref<2x32x16xf32, #tpu.memory_space<vmem>>, vector<1x32x16xf32>
      %151 = vector.shape_cast %150 : vector<1x32x16xf32> to vector<32x16xf32>
      %cst_105 = arith.constant dense<0.000000e+00> : vector<8x16xf32>
      %152 = tpu.matmul %149, %151, %cst_105 {dimension_numbers = #tpu.dot_dimension_numbers<[1], [0], [0], [1], [0, 0, 1, 1], [], []>} : vector<8x32xf32>, vector<32x16xf32>, vector<8x16xf32> -> vector<8x16xf32>
      %c0_106 = arith.constant 0 : index
      %c0_107 = arith.constant 0 : index
      %c0_108 = arith.constant 0 : index
      %153 = vector.load %arg8[%c0_106, %c0_107, %c0_108] : memref<2x1x16xf32, #tpu.memory_space<vmem>>, vector<1x1x16xf32>
      %154 = vector.shape_cast %153 : vector<1x1x16xf32> to vector<1x16xf32>
      %155 = vector.broadcast %154 : vector<1x16xf32> to vector<8x16xf32>
      %156 = arith.addf %152, %155 : vector<8x16xf32>
      %cst_109 = arith.constant 2.500000e-01 : f32
      %157 = vector.broadcast %cst_109 : f32 to vector<8x16xf32>
      %158 = arith.mulf %156, %157 : vector<8x16xf32>
      %c0_110 = arith.constant 0 : index
      %c0_111 = arith.constant 0 : index
      %c0_112 = arith.constant 0 : index
      %159 = vector.load %arg22[%c0_110, %c0_111, %c0_112] : memref<2x8x16xf32, #tpu.memory_space<vmem>>, vector<1x8x16xf32>
      %160 = vector.shape_cast %159 : vector<1x8x16xf32> to vector<8x16xf32>
      %161 = vector.shape_cast %158 : vector<8x16xf32> to vector<1x8x16xf32>
      tpu.vector_store %arg22[%c0_110, %c0_111, %c0_112], %161 {strides = array<i32>} : memref<2x8x16xf32, #tpu.memory_space<vmem>>, vector<1x8x16xf32>,
      %c1_113 = arith.constant 1 : index
      %c0_114 = arith.constant 0 : index
      %c0_115 = arith.constant 0 : index
      %162 = vector.load %arg7[%c1_113, %c0_114, %c0_115] : memref<2x32x16xf32, #tpu.memory_space<vmem>>, vector<1x32x16xf32>
      %163 = vector.shape_cast %162 : vector<1x32x16xf32> to vector<32x16xf32>
      %cst_116 = arith.constant dense<0.000000e+00> : vector<8x16xf32>
      %164 = tpu.matmul %149, %163, %cst_116 {dimension_numbers = #tpu.dot_dimension_numbers<[1], [0], [0], [1], [0, 0, 1, 1], [], []>} : vector<8x32xf32>, vector<32x16xf32>, vector<8x16xf32> -> vector<8x16xf32>
      %c1_117 = arith.constant 1 : index
      %c0_118 = arith.constant 0 : index
      %c0_119 = arith.constant 0 : index
      %165 = vector.load %arg8[%c1_117, %c0_118, %c0_119] : memref<2x1x16xf32, #tpu.memory_space<vmem>>, vector<1x1x16xf32>
      %166 = vector.shape_cast %165 : vector<1x1x16xf32> to vector<1x16xf32>
      %167 = vector.broadcast %166 : vector<1x16xf32> to vector<8x16xf32>
      %168 = arith.addf %164, %167 : vector<8x16xf32>
      %cst_120 = arith.constant 2.500000e-01 : f32
      %169 = vector.broadcast %cst_120 : f32 to vector<8x16xf32>
      %170 = arith.mulf %168, %169 : vector<8x16xf32>
      %c1_121 = arith.constant 1 : index
      %c0_122 = arith.constant 0 : index
      %c0_123 = arith.constant 0 : index
      %171 = vector.load %arg22[%c1_121, %c0_122, %c0_123] : memref<2x8x16xf32, #tpu.memory_space<vmem>>, vector<1x8x16xf32>
      %172 = vector.shape_cast %171 : vector<1x8x16xf32> to vector<8x16xf32>
      %173 = vector.shape_cast %170 : vector<8x16xf32> to vector<1x8x16xf32>
      tpu.vector_store %arg22[%c1_121, %c0_122, %c0_123], %173 {strides = array<i32>} : memref<2x8x16xf32, #tpu.memory_space<vmem>>, vector<1x8x16xf32>,
      %cst_124 = arith.constant 0xFF800000 : f32
      %174 = vector.broadcast %cst_124 : f32 to vector<2x8x1xf32>
      %c0_125 = arith.constant 0 : index
      %c0_126 = arith.constant 0 : index
      %c0_127 = arith.constant 0 : index
      %175 = vector.load %arg23[%c0_125, %c0_126, %c0_127] : memref<2x8x1xf32, #tpu.memory_space<vmem>>, vector<2x8x1xf32>
      tpu.vector_store %arg23[%c0_125, %c0_126, %c0_127], %174 {strides = array<i32>} : memref<2x8x1xf32, #tpu.memory_space<vmem>>, vector<2x8x1xf32>,
      %cst_128 = arith.constant 0.000000e+00 : f32
      %176 = vector.broadcast %cst_128 : f32 to vector<2x8x1xf32>
      %c0_129 = arith.constant 0 : index
      %c0_130 = arith.constant 0 : index
      %c0_131 = arith.constant 0 : index
      %177 = vector.load %arg24[%c0_129, %c0_130, %c0_131] : memref<2x8x1xf32, #tpu.memory_space<vmem>>, vector<2x8x1xf32>
      tpu.vector_store %arg24[%c0_129, %c0_130, %c0_131], %176 {strides = array<i32>} : memref<2x8x1xf32, #tpu.memory_space<vmem>>, vector<2x8x1xf32>,
      %cst_132 = arith.constant 0.000000e+00 : f32
      %178 = vector.broadcast %cst_132 : f32 to vector<2x8x16xf32>
      %c0_133 = arith.constant 0 : index
      %c0_134 = arith.constant 0 : index
      %c0_135 = arith.constant 0 : index
      %179 = vector.load %arg25[%c0_133, %c0_134, %c0_135] : memref<2x8x16xf32, #tpu.memory_space<vmem>>, vector<2x8x16xf32>
      tpu.vector_store %arg25[%c0_133, %c0_134, %c0_135], %178 {strides = array<i32>} : memref<2x8x16xf32, #tpu.memory_space<vmem>>, vector<2x8x16xf32>,
    } else {
    }
    %c0 = arith.constant 0 : index
    %c0_1 = arith.constant 0 : index
    %c0_2 = arith.constant 0 : index
    %3 = vector.load %arg4[%c0, %c0_1, %c0_2] : memref<1x8x32xf32, #tpu.memory_space<vmem>>, vector<1x8x32xf32>
    %4 = vector.shape_cast %3 : vector<1x8x32xf32> to vector<8x32xf32>
    %c0_3 = arith.constant 0 : index
    %c0_4 = arith.constant 0 : index
    %5 = vector.load %arg5[%c0_3, %c0_4] : memref<1x32xf32, #tpu.memory_space<vmem>>, vector<1x32xf32>
    %c0_5 = arith.constant 0 : index
    %c0_6 = arith.constant 0 : index
    %6 = vector.load %arg6[%c0_5, %c0_6] : memref<1x32xf32, #tpu.memory_space<vmem>>, vector<1x32xf32>
    %cst = arith.constant dense<0.000000e+00> : vector<8xf32>
    %7 = vector.multi_reduction <add>, %4, %cst [1] : vector<8x32xf32> to vector<8xf32>
    %8 = vector.shape_cast %7 : vector<8xf32> to vector<8x1xf32>
    %cst_7 = arith.constant 3.200000e+01 : f32
    %9 = vector.broadcast %cst_7 : f32 to vector<8x1xf32>
    %10 = arith.divf %8, %9 : vector<8x1xf32>
    %11 = vector.broadcast %10 : vector<8x1xf32> to vector<8x32xf32>
    %12 = arith.subf %4, %11 : vector<8x32xf32>
    %13 = arith.mulf %12, %12 : vector<8x32xf32>
    %cst_8 = arith.constant dense<0.000000e+00> : vector<8xf32>
    %14 = vector.multi_reduction <add>, %13, %cst_8 [1] : vector<8x32xf32> to vector<8xf32>
    %15 = vector.shape_cast %14 : vector<8xf32> to vector<8x1xf32>
    %cst_9 = arith.constant 3.200000e+01 : f32
    %16 = vector.broadcast %cst_9 : f32 to vector<8x1xf32>
    %17 = arith.divf %15, %16 : vector<8x1xf32>
    %cst_10 = arith.constant 9.99999974E-6 : f32
    %18 = vector.broadcast %cst_10 : f32 to vector<8x1xf32>
    %19 = arith.addf %17, %18 : vector<8x1xf32>
    %20 = math.rsqrt %19 : vector<8x1xf32>
    %21 = vector.broadcast %20 : vector<8x1xf32> to vector<8x32xf32>
    %22 = arith.mulf %12, %21 : vector<8x32xf32>
    %23 = vector.broadcast %5 : vector<1x32xf32> to vector<8x32xf32>
    %24 = arith.mulf %22, %23 : vector<8x32xf32>
    %25 = vector.broadcast %6 : vector<1x32xf32> to vector<8x32xf32>
    %26 = arith.addf %24, %25 : vector<8x32xf32>
    %c0_11 = arith.constant 0 : index
    %c0_12 = arith.constant 0 : index
    %c0_13 = arith.constant 0 : index
    %27 = vector.load %arg9[%c0_11, %c0_12, %c0_13] : memref<2x32x16xf32, #tpu.memory_space<vmem>>, vector<1x32x16xf32>
    %28 = vector.shape_cast %27 : vector<1x32x16xf32> to vector<32x16xf32>
    %cst_14 = arith.constant dense<0.000000e+00> : vector<8x16xf32>
    %29 = tpu.matmul %26, %28, %cst_14 {dimension_numbers = #tpu.dot_dimension_numbers<[1], [0], [0], [1], [0, 0, 1, 1], [], []>} : vector<8x32xf32>, vector<32x16xf32>, vector<8x16xf32> -> vector<8x16xf32>
    %c0_15 = arith.constant 0 : index
    %c0_16 = arith.constant 0 : index
    %c0_17 = arith.constant 0 : index
    %30 = vector.load %arg10[%c0_15, %c0_16, %c0_17] : memref<2x1x16xf32, #tpu.memory_space<vmem>>, vector<1x1x16xf32>
    %31 = vector.shape_cast %30 : vector<1x1x16xf32> to vector<1x16xf32>
    %32 = vector.broadcast %31 : vector<1x16xf32> to vector<8x16xf32>
    %33 = arith.addf %29, %32 : vector<8x16xf32>
    %c0_18 = arith.constant 0 : index
    %c0_19 = arith.constant 0 : index
    %c0_20 = arith.constant 0 : index
    %34 = vector.load %arg11[%c0_18, %c0_19, %c0_20] : memref<2x32x16xf32, #tpu.memory_space<vmem>>, vector<1x32x16xf32>
    %35 = vector.shape_cast %34 : vector<1x32x16xf32> to vector<32x16xf32>
    %cst_21 = arith.constant dense<0.000000e+00> : vector<8x16xf32>
    %36 = tpu.matmul %26, %35, %cst_21 {dimension_numbers = #tpu.dot_dimension_numbers<[1], [0], [0], [1], [0, 0, 1, 1], [], []>} : vector<8x32xf32>, vector<32x16xf32>, vector<8x16xf32> -> vector<8x16xf32>
    %c0_22 = arith.constant 0 : index
    %c0_23 = arith.constant 0 : index
    %c0_24 = arith.constant 0 : index
    %37 = vector.load %arg12[%c0_22, %c0_23, %c0_24] : memref<2x1x16xf32, #tpu.memory_space<vmem>>, vector<1x1x16xf32>
    %38 = vector.shape_cast %37 : vector<1x1x16xf32> to vector<1x16xf32>
    %39 = vector.broadcast %38 : vector<1x16xf32> to vector<8x16xf32>
    %40 = arith.addf %36, %39 : vector<8x16xf32>
    %c0_25 = arith.constant 0 : index
    %c0_26 = arith.constant 0 : index
    %c0_27 = arith.constant 0 : index
    %41 = vector.load %arg22[%c0_25, %c0_26, %c0_27] : memref<2x8x16xf32, #tpu.memory_space<vmem>>, vector<1x8x16xf32>
    %42 = vector.shape_cast %41 : vector<1x8x16xf32> to vector<8x16xf32>
    %cst_28 = arith.constant dense<0.000000e+00> : vector<8x8xf32>
    %43 = tpu.matmul %42, %33, %cst_28 {dimension_numbers = #tpu.dot_dimension_numbers<[1], [1], [0], [0], [0, 0, 1, 0], [], []>} : vector<8x16xf32>, vector<8x16xf32>, vector<8x8xf32> -> vector<8x8xf32>
    %c0_29 = arith.constant 0 : index
    %c0_30 = arith.constant 0 : index
    %c0_31 = arith.constant 0 : index
    %44 = vector.load %arg23[%c0_29, %c0_30, %c0_31] : memref<2x8x1xf32, #tpu.memory_space<vmem>>, vector<1x8x1xf32>
    %45 = vector.shape_cast %44 : vector<1x8x1xf32> to vector<8x1xf32>
    %cst_32 = arith.constant dense<0xFF800000> : vector<8xf32>
    %46 = vector.multi_reduction <maximumf>, %43, %cst_32 [1] : vector<8x8xf32> to vector<8xf32>
    %47 = vector.shape_cast %46 : vector<8xf32> to vector<8x1xf32>
    %48 = arith.maximumf %45, %47 : vector<8x1xf32>
    %49 = arith.subf %45, %48 : vector<8x1xf32>
    %50 = math.exp %49 : vector<8x1xf32>
    %51 = vector.broadcast %48 : vector<8x1xf32> to vector<8x8xf32>
    %52 = arith.subf %43, %51 : vector<8x8xf32>
    %53 = math.exp %52 : vector<8x8xf32>
    %c0_33 = arith.constant 0 : index
    %c0_34 = arith.constant 0 : index
    %c0_35 = arith.constant 0 : index
    %54 = vector.load %arg24[%c0_33, %c0_34, %c0_35] : memref<2x8x1xf32, #tpu.memory_space<vmem>>, vector<1x8x1xf32>
    %55 = vector.shape_cast %54 : vector<1x8x1xf32> to vector<8x1xf32>
    %56 = arith.mulf %50, %55 : vector<8x1xf32>
    %cst_36 = arith.constant dense<0.000000e+00> : vector<8xf32>
    %57 = vector.multi_reduction <add>, %53, %cst_36 [1] : vector<8x8xf32> to vector<8xf32>
    %58 = vector.shape_cast %57 : vector<8xf32> to vector<8x1xf32>
    %59 = arith.addf %56, %58 : vector<8x1xf32>
    %c0_37 = arith.constant 0 : index
    %c0_38 = arith.constant 0 : index
    %c0_39 = arith.constant 0 : index
    %60 = vector.load %arg24[%c0_37, %c0_38, %c0_39] : memref<2x8x1xf32, #tpu.memory_space<vmem>>, vector<1x8x1xf32>
    %61 = vector.shape_cast %60 : vector<1x8x1xf32> to vector<8x1xf32>
    %62 = vector.shape_cast %59 : vector<8x1xf32> to vector<1x8x1xf32>
    tpu.vector_store %arg24[%c0_37, %c0_38, %c0_39], %62 {strides = array<i32>} : memref<2x8x1xf32, #tpu.memory_space<vmem>>, vector<1x8x1xf32>,
    %c0_40 = arith.constant 0 : index
    %c0_41 = arith.constant 0 : index
    %c0_42 = arith.constant 0 : index
    %63 = vector.load %arg25[%c0_40, %c0_41, %c0_42] : memref<2x8x16xf32, #tpu.memory_space<vmem>>, vector<1x8x16xf32>
    %64 = vector.shape_cast %63 : vector<1x8x16xf32> to vector<8x16xf32>
    %65 = vector.broadcast %50 : vector<8x1xf32> to vector<8x16xf32>
    %66 = arith.mulf %65, %64 : vector<8x16xf32>
    %cst_43 = arith.constant dense<0.000000e+00> : vector<8x16xf32>
    %67 = tpu.matmul %53, %40, %cst_43 {dimension_numbers = #tpu.dot_dimension_numbers<[1], [0], [0], [1], [0, 0, 1, 1], [], []>} : vector<8x8xf32>, vector<8x16xf32>, vector<8x16xf32> -> vector<8x16xf32>
    %68 = arith.addf %66, %67 : vector<8x16xf32>
    %c0_44 = arith.constant 0 : index
    %c0_45 = arith.constant 0 : index
    %c0_46 = arith.constant 0 : index
    %69 = vector.load %arg25[%c0_44, %c0_45, %c0_46] : memref<2x8x16xf32, #tpu.memory_space<vmem>>, vector<1x8x16xf32>
    %70 = vector.shape_cast %69 : vector<1x8x16xf32> to vector<8x16xf32>
    %71 = vector.shape_cast %68 : vector<8x16xf32> to vector<1x8x16xf32>
    tpu.vector_store %arg25[%c0_44, %c0_45, %c0_46], %71 {strides = array<i32>} : memref<2x8x16xf32, #tpu.memory_space<vmem>>, vector<1x8x16xf32>,
    %c0_47 = arith.constant 0 : index
    %c0_48 = arith.constant 0 : index
    %c0_49 = arith.constant 0 : index
    %72 = vector.load %arg23[%c0_47, %c0_48, %c0_49] : memref<2x8x1xf32, #tpu.memory_space<vmem>>, vector<1x8x1xf32>
    %73 = vector.shape_cast %72 : vector<1x8x1xf32> to vector<8x1xf32>
    %74 = vector.shape_cast %48 : vector<8x1xf32> to vector<1x8x1xf32>
    tpu.vector_store %arg23[%c0_47, %c0_48, %c0_49], %74 {strides = array<i32>} : memref<2x8x1xf32, #tpu.memory_space<vmem>>, vector<1x8x1xf32>,
    %c1 = arith.constant 1 : index
    %c0_50 = arith.constant 0 : index
    %c0_51 = arith.constant 0 : index
    %75 = vector.load %arg9[%c1, %c0_50, %c0_51] : memref<2x32x16xf32, #tpu.memory_space<vmem>>, vector<1x32x16xf32>
    %76 = vector.shape_cast %75 : vector<1x32x16xf32> to vector<32x16xf32>
    %cst_52 = arith.constant dense<0.000000e+00> : vector<8x16xf32>
    %77 = tpu.matmul %26, %76, %cst_52 {dimension_numbers = #tpu.dot_dimension_numbers<[1], [0], [0], [1], [0, 0, 1, 1], [], []>} : vector<8x32xf32>, vector<32x16xf32>, vector<8x16xf32> -> vector<8x16xf32>
    %c1_53 = arith.constant 1 : index
    %c0_54 = arith.constant 0 : index
    %c0_55 = arith.constant 0 : index
    %78 = vector.load %arg10[%c1_53, %c0_54, %c0_55] : memref<2x1x16xf32, #tpu.memory_space<vmem>>, vector<1x1x16xf32>
    %79 = vector.shape_cast %78 : vector<1x1x16xf32> to vector<1x16xf32>
    %80 = vector.broadcast %79 : vector<1x16xf32> to vector<8x16xf32>
    %81 = arith.addf %77, %80 : vector<8x16xf32>
    %c1_56 = arith.constant 1 : index
    %c0_57 = arith.constant 0 : index
    %c0_58 = arith.constant 0 : index
    %82 = vector.load %arg11[%c1_56, %c0_57, %c0_58] : memref<2x32x16xf32, #tpu.memory_space<vmem>>, vector<1x32x16xf32>
    %83 = vector.shape_cast %82 : vector<1x32x16xf32> to vector<32x16xf32>
    %cst_59 = arith.constant dense<0.000000e+00> : vector<8x16xf32>
    %84 = tpu.matmul %26, %83, %cst_59 {dimension_numbers = #tpu.dot_dimension_numbers<[1], [0], [0], [1], [0, 0, 1, 1], [], []>} : vector<8x32xf32>, vector<32x16xf32>, vector<8x16xf32> -> vector<8x16xf32>
    %c1_60 = arith.constant 1 : index
    %c0_61 = arith.constant 0 : index
    %c0_62 = arith.constant 0 : index
    %85 = vector.load %arg12[%c1_60, %c0_61, %c0_62] : memref<2x1x16xf32, #tpu.memory_space<vmem>>, vector<1x1x16xf32>
    %86 = vector.shape_cast %85 : vector<1x1x16xf32> to vector<1x16xf32>
    %87 = vector.broadcast %86 : vector<1x16xf32> to vector<8x16xf32>
    %88 = arith.addf %84, %87 : vector<8x16xf32>
    %c1_63 = arith.constant 1 : index
    %c0_64 = arith.constant 0 : index
    %c0_65 = arith.constant 0 : index
    %89 = vector.load %arg22[%c1_63, %c0_64, %c0_65] : memref<2x8x16xf32, #tpu.memory_space<vmem>>, vector<1x8x16xf32>
    %90 = vector.shape_cast %89 : vector<1x8x16xf32> to vector<8x16xf32>
    %cst_66 = arith.constant dense<0.000000e+00> : vector<8x8xf32>
    %91 = tpu.matmul %90, %81, %cst_66 {dimension_numbers = #tpu.dot_dimension_numbers<[1], [1], [0], [0], [0, 0, 1, 0], [], []>} : vector<8x16xf32>, vector<8x16xf32>, vector<8x8xf32> -> vector<8x8xf32>
    %c1_67 = arith.constant 1 : index
    %c0_68 = arith.constant 0 : index
    %c0_69 = arith.constant 0 : index
    %92 = vector.load %arg23[%c1_67, %c0_68, %c0_69] : memref<2x8x1xf32, #tpu.memory_space<vmem>>, vector<1x8x1xf32>
    %93 = vector.shape_cast %92 : vector<1x8x1xf32> to vector<8x1xf32>
    %cst_70 = arith.constant dense<0xFF800000> : vector<8xf32>
    %94 = vector.multi_reduction <maximumf>, %91, %cst_70 [1] : vector<8x8xf32> to vector<8xf32>
    %95 = vector.shape_cast %94 : vector<8xf32> to vector<8x1xf32>
    %96 = arith.maximumf %93, %95 : vector<8x1xf32>
    %97 = arith.subf %93, %96 : vector<8x1xf32>
    %98 = math.exp %97 : vector<8x1xf32>
    %99 = vector.broadcast %96 : vector<8x1xf32> to vector<8x8xf32>
    %100 = arith.subf %91, %99 : vector<8x8xf32>
    %101 = math.exp %100 : vector<8x8xf32>
    %c1_71 = arith.constant 1 : index
    %c0_72 = arith.constant 0 : index
    %c0_73 = arith.constant 0 : index
    %102 = vector.load %arg24[%c1_71, %c0_72, %c0_73] : memref<2x8x1xf32, #tpu.memory_space<vmem>>, vector<1x8x1xf32>
    %103 = vector.shape_cast %102 : vector<1x8x1xf32> to vector<8x1xf32>
    %104 = arith.mulf %98, %103 : vector<8x1xf32>
    %cst_74 = arith.constant dense<0.000000e+00> : vector<8xf32>
    %105 = vector.multi_reduction <add>, %101, %cst_74 [1] : vector<8x8xf32> to vector<8xf32>
    %106 = vector.shape_cast %105 : vector<8xf32> to vector<8x1xf32>
    %107 = arith.addf %104, %106 : vector<8x1xf32>
    %c1_75 = arith.constant 1 : index
    %c0_76 = arith.constant 0 : index
    %c0_77 = arith.constant 0 : index
    %108 = vector.load %arg24[%c1_75, %c0_76, %c0_77] : memref<2x8x1xf32, #tpu.memory_space<vmem>>, vector<1x8x1xf32>
    %109 = vector.shape_cast %108 : vector<1x8x1xf32> to vector<8x1xf32>
    %110 = vector.shape_cast %107 : vector<8x1xf32> to vector<1x8x1xf32>
    tpu.vector_store %arg24[%c1_75, %c0_76, %c0_77], %110 {strides = array<i32>} : memref<2x8x1xf32, #tpu.memory_space<vmem>>, vector<1x8x1xf32>,
    %c1_78 = arith.constant 1 : index
    %c0_79 = arith.constant 0 : index
    %c0_80 = arith.constant 0 : index
    %111 = vector.load %arg25[%c1_78, %c0_79, %c0_80] : memref<2x8x16xf32, #tpu.memory_space<vmem>>, vector<1x8x16xf32>
    %112 = vector.shape_cast %111 : vector<1x8x16xf32> to vector<8x16xf32>
    %113 = vector.broadcast %98 : vector<8x1xf32> to vector<8x16xf32>
    %114 = arith.mulf %113, %112 : vector<8x16xf32>
    %cst_81 = arith.constant dense<0.000000e+00> : vector<8x16xf32>
    %115 = tpu.matmul %101, %88, %cst_81 {dimension_numbers = #tpu.dot_dimension_numbers<[1], [0], [0], [1], [0, 0, 1, 1], [], []>} : vector<8x8xf32>, vector<8x16xf32>, vector<8x16xf32> -> vector<8x16xf32>
    %116 = arith.addf %114, %115 : vector<8x16xf32>
    %c1_82 = arith.constant 1 : index
    %c0_83 = arith.constant 0 : index
    %c0_84 = arith.constant 0 : index
    %117 = vector.load %arg25[%c1_82, %c0_83, %c0_84] : memref<2x8x16xf32, #tpu.memory_space<vmem>>, vector<1x8x16xf32>
    %118 = vector.shape_cast %117 : vector<1x8x16xf32> to vector<8x16xf32>
    %119 = vector.shape_cast %116 : vector<8x16xf32> to vector<1x8x16xf32>
    tpu.vector_store %arg25[%c1_82, %c0_83, %c0_84], %119 {strides = array<i32>} : memref<2x8x16xf32, #tpu.memory_space<vmem>>, vector<1x8x16xf32>,
    %c1_85 = arith.constant 1 : index
    %c0_86 = arith.constant 0 : index
    %c0_87 = arith.constant 0 : index
    %120 = vector.load %arg23[%c1_85, %c0_86, %c0_87] : memref<2x8x1xf32, #tpu.memory_space<vmem>>, vector<1x8x1xf32>
    %121 = vector.shape_cast %120 : vector<1x8x1xf32> to vector<8x1xf32>
    %122 = vector.shape_cast %96 : vector<8x1xf32> to vector<1x8x1xf32>
    tpu.vector_store %arg23[%c1_85, %c0_86, %c0_87], %122 {strides = array<i32>} : memref<2x8x1xf32, #tpu.memory_space<vmem>>, vector<1x8x1xf32>,
    %c0_i32_88 = arith.constant 0 : i32
    %123 = arith.cmpi eq, %arg2, %c0_i32_88 : i32
    %124 = arith.extui %123 : i1 to i32
    %c0_i32_89 = arith.constant 0 : i32
    %125 = arith.cmpi ne, %124, %c0_i32_89 : i32
    scf.if %125 {
      %c0_90 = arith.constant 0 : index
      %c0_91 = arith.constant 0 : index
      %c0_92 = arith.constant 0 : index
      %126 = vector.load %arg3[%c0_90, %c0_91, %c0_92] : memref<1x8x32xf32, #tpu.memory_space<vmem>>, vector<1x8x32xf32>
      %127 = vector.shape_cast %126 : vector<1x8x32xf32> to vector<8x32xf32>
      %cst_93 = arith.constant 0.000000e+00 : f32
      %128 = vector.broadcast %cst_93 : f32 to vector<8x32xf32>
      %c0_94 = arith.constant 0 : index
      %c0_95 = arith.constant 0 : index
      %c0_96 = arith.constant 0 : index
      %129 = vector.load %arg24[%c0_94, %c0_95, %c0_96] : memref<2x8x1xf32, #tpu.memory_space<vmem>>, vector<1x8x1xf32>
      %130 = vector.shape_cast %129 : vector<1x8x1xf32> to vector<8x1xf32>
      %131 = tpu.reciprocal %130 : vector<8x1xf32> -> vector<8x1xf32>
      %c0_97 = arith.constant 0 : index
      %c0_98 = arith.constant 0 : index
      %c0_99 = arith.constant 0 : index
      %132 = vector.load %arg25[%c0_97, %c0_98, %c0_99] : memref<2x8x16xf32, #tpu.memory_space<vmem>>, vector<1x8x16xf32>
      %133 = vector.shape_cast %132 : vector<1x8x16xf32> to vector<8x16xf32>
      %134 = vector.broadcast %131 : vector<8x1xf32> to vector<8x16xf32>
      %135 = arith.mulf %133, %134 : vector<8x16xf32>
      %c0_100 = arith.constant 0 : index
      %c0_101 = arith.constant 0 : index
      %c0_102 = arith.constant 0 : index
      %136 = vector.load %arg13[%c0_100, %c0_101, %c0_102] : memref<2x16x32xf32, #tpu.memory_space<vmem>>, vector<1x16x32xf32>
      %137 = vector.shape_cast %136 : vector<1x16x32xf32> to vector<16x32xf32>
      %cst_103 = arith.constant dense<0.000000e+00> : vector<8x32xf32>
      %138 = tpu.matmul %135, %137, %cst_103 {dimension_numbers = #tpu.dot_dimension_numbers<[1], [0], [0], [1], [0, 0, 1, 1], [], []>} : vector<8x16xf32>, vector<16x32xf32>, vector<8x32xf32> -> vector<8x32xf32>
      %139 = arith.addf %128, %138 : vector<8x32xf32>
      %c1_104 = arith.constant 1 : index
      %c0_105 = arith.constant 0 : index
      %c0_106 = arith.constant 0 : index
      %140 = vector.load %arg24[%c1_104, %c0_105, %c0_106] : memref<2x8x1xf32, #tpu.memory_space<vmem>>, vector<1x8x1xf32>
      %141 = vector.shape_cast %140 : vector<1x8x1xf32> to vector<8x1xf32>
      %142 = tpu.reciprocal %141 : vector<8x1xf32> -> vector<8x1xf32>
      %c1_107 = arith.constant 1 : index
      %c0_108 = arith.constant 0 : index
      %c0_109 = arith.constant 0 : index
      %143 = vector.load %arg25[%c1_107, %c0_108, %c0_109] : memref<2x8x16xf32, #tpu.memory_space<vmem>>, vector<1x8x16xf32>
      %144 = vector.shape_cast %143 : vector<1x8x16xf32> to vector<8x16xf32>
      %145 = vector.broadcast %142 : vector<8x1xf32> to vector<8x16xf32>
      %146 = arith.mulf %144, %145 : vector<8x16xf32>
      %c1_110 = arith.constant 1 : index
      %c0_111 = arith.constant 0 : index
      %c0_112 = arith.constant 0 : index
      %147 = vector.load %arg13[%c1_110, %c0_111, %c0_112] : memref<2x16x32xf32, #tpu.memory_space<vmem>>, vector<1x16x32xf32>
      %148 = vector.shape_cast %147 : vector<1x16x32xf32> to vector<16x32xf32>
      %cst_113 = arith.constant dense<0.000000e+00> : vector<8x32xf32>
      %149 = tpu.matmul %146, %148, %cst_113 {dimension_numbers = #tpu.dot_dimension_numbers<[1], [0], [0], [1], [0, 0, 1, 1], [], []>} : vector<8x16xf32>, vector<16x32xf32>, vector<8x32xf32> -> vector<8x32xf32>
      %150 = arith.addf %139, %149 : vector<8x32xf32>
      %151 = arith.addf %127, %150 : vector<8x32xf32>
      %c0_114 = arith.constant 0 : index
      %c0_115 = arith.constant 0 : index
      %152 = vector.load %arg14[%c0_114, %c0_115] : memref<1x32xf32, #tpu.memory_space<vmem>>, vector<1x32xf32>
      %153 = vector.broadcast %152 : vector<1x32xf32> to vector<8x32xf32>
      %154 = arith.addf %151, %153 : vector<8x32xf32>
      %c0_116 = arith.constant 0 : index
      %c0_117 = arith.constant 0 : index
      %155 = vector.load %arg15[%c0_116, %c0_117] : memref<1x32xf32, #tpu.memory_space<vmem>>, vector<1x32xf32>
      %c0_118 = arith.constant 0 : index
      %c0_119 = arith.constant 0 : index
      %156 = vector.load %arg16[%c0_118, %c0_119] : memref<1x32xf32, #tpu.memory_space<vmem>>, vector<1x32xf32>
      %cst_120 = arith.constant dense<0.000000e+00> : vector<8xf32>
      %157 = vector.multi_reduction <add>, %154, %cst_120 [1] : vector<8x32xf32> to vector<8xf32>
      %158 = vector.shape_cast %157 : vector<8xf32> to vector<8x1xf32>
      %cst_121 = arith.constant 3.200000e+01 : f32
      %159 = vector.broadcast %cst_121 : f32 to vector<8x1xf32>
      %160 = arith.divf %158, %159 : vector<8x1xf32>
      %161 = vector.broadcast %160 : vector<8x1xf32> to vector<8x32xf32>
      %162 = arith.subf %154, %161 : vector<8x32xf32>
      %163 = arith.mulf %162, %162 : vector<8x32xf32>
      %cst_122 = arith.constant dense<0.000000e+00> : vector<8xf32>
      %164 = vector.multi_reduction <add>, %163, %cst_122 [1] : vector<8x32xf32> to vector<8xf32>
      %165 = vector.shape_cast %164 : vector<8xf32> to vector<8x1xf32>
      %cst_123 = arith.constant 3.200000e+01 : f32
      %166 = vector.broadcast %cst_123 : f32 to vector<8x1xf32>
      %167 = arith.divf %165, %166 : vector<8x1xf32>
      %cst_124 = arith.constant 9.99999974E-6 : f32
      %168 = vector.broadcast %cst_124 : f32 to vector<8x1xf32>
      %169 = arith.addf %167, %168 : vector<8x1xf32>
      %170 = math.rsqrt %169 : vector<8x1xf32>
      %171 = vector.broadcast %170 : vector<8x1xf32> to vector<8x32xf32>
      %172 = arith.mulf %162, %171 : vector<8x32xf32>
      %173 = vector.broadcast %155 : vector<1x32xf32> to vector<8x32xf32>
      %174 = arith.mulf %172, %173 : vector<8x32xf32>
      %175 = vector.broadcast %156 : vector<1x32xf32> to vector<8x32xf32>
      %176 = arith.addf %174, %175 : vector<8x32xf32>
      %c0_125 = arith.constant 0 : index
      %c0_126 = arith.constant 0 : index
      %177 = vector.load %arg17[%c0_125, %c0_126] : memref<32x64xf32, #tpu.memory_space<vmem>>, vector<32x64xf32>
      %cst_127 = arith.constant dense<0.000000e+00> : vector<8x64xf32>
      %178 = tpu.matmul %176, %177, %cst_127 {dimension_numbers = #tpu.dot_dimension_numbers<[1], [0], [0], [1], [0, 0, 1, 1], [], []>} : vector<8x32xf32>, vector<32x64xf32>, vector<8x64xf32> -> vector<8x64xf32>
      %c0_128 = arith.constant 0 : index
      %c0_129 = arith.constant 0 : index
      %179 = vector.load %arg18[%c0_128, %c0_129] : memref<1x64xf32, #tpu.memory_space<vmem>>, vector<1x64xf32>
      %180 = vector.broadcast %179 : vector<1x64xf32> to vector<8x64xf32>
      %181 = arith.addf %178, %180 : vector<8x64xf32>
      %182 = arith.negf %181 : vector<8x64xf32>
      %183 = math.exp %182 : vector<8x64xf32>
      %cst_130 = arith.constant 1.000000e+00 : f32
      %184 = vector.broadcast %cst_130 : f32 to vector<8x64xf32>
      %185 = arith.addf %184, %183 : vector<8x64xf32>
      %186 = arith.divf %184, %185 : vector<8x64xf32>
      %187 = arith.mulf %181, %186 : vector<8x64xf32>
      %c0_131 = arith.constant 0 : index
      %c0_132 = arith.constant 0 : index
      %188 = vector.load %arg19[%c0_131, %c0_132] : memref<64x32xf32, #tpu.memory_space<vmem>>, vector<64x32xf32>
      %cst_133 = arith.constant dense<0.000000e+00> : vector<8x32xf32>
      %189 = tpu.matmul %187, %188, %cst_133 {dimension_numbers = #tpu.dot_dimension_numbers<[1], [0], [0], [1], [0, 0, 1, 1], [], []>} : vector<8x64xf32>, vector<64x32xf32>, vector<8x32xf32> -> vector<8x32xf32>
      %c0_134 = arith.constant 0 : index
      %c0_135 = arith.constant 0 : index
      %190 = vector.load %arg20[%c0_134, %c0_135] : memref<1x32xf32, #tpu.memory_space<vmem>>, vector<1x32xf32>
      %191 = vector.broadcast %190 : vector<1x32xf32> to vector<8x32xf32>
      %192 = arith.addf %189, %191 : vector<8x32xf32>
      %193 = arith.addf %154, %192 : vector<8x32xf32>
      %c0_136 = arith.constant 0 : index
      %c0_137 = arith.constant 0 : index
      %c0_138 = arith.constant 0 : index
      %194 = vector.load %arg21[%c0_136, %c0_137, %c0_138] : memref<1x8x32xf32, #tpu.memory_space<vmem>>, vector<1x8x32xf32>
      %195 = vector.shape_cast %194 : vector<1x8x32xf32> to vector<8x32xf32>
      %196 = vector.shape_cast %193 : vector<8x32xf32> to vector<1x8x32xf32>
      tpu.vector_store %arg21[%c0_136, %c0_137, %c0_138], %196 {strides = array<i32>} : memref<1x8x32xf32, #tpu.memory_space<vmem>>, vector<1x8x32xf32>,
    } else {
    }
    return
  }
  func.func @transform_0(%arg0: i32, %arg1: i32, %arg2: i32) -> (i32, i32, i32) {
    %c0_i32 = arith.constant 0 : i32
    %c0_i32_0 = arith.constant 0 : i32
    return %arg0, %arg1, %c0_i32 : i32, i32, i32
  }
  func.func @transform_1(%arg0: i32, %arg1: i32, %arg2: i32) -> (i32, i32, i32) {
    %c0_i32 = arith.constant 0 : i32
    %c0_i32_0 = arith.constant 0 : i32
    return %arg0, %arg2, %c0_i32 : i32, i32, i32
  }
  func.func @transform_2(%arg0: i32, %arg1: i32, %arg2: i32) -> (i32, i32) {
    %c0_i32 = arith.constant 0 : i32
    %c0_i32_0 = arith.constant 0 : i32
    %c0_i32_1 = arith.constant 0 : i32
    return %c0_i32, %c0_i32_0 : i32, i32
  }
  func.func @transform_3(%arg0: i32, %arg1: i32, %arg2: i32) -> (i32, i32) {
    %c0_i32 = arith.constant 0 : i32
    %c0_i32_0 = arith.constant 0 : i32
    %c0_i32_1 = arith.constant 0 : i32
    return %c0_i32, %c0_i32_0 : i32, i32
  }
  func.func @transform_4(%arg0: i32, %arg1: i32, %arg2: i32) -> (i32, i32, i32) {
    %c0_i32 = arith.constant 0 : i32
    %c0_i32_0 = arith.constant 0 : i32
    %c0_i32_1 = arith.constant 0 : i32
    %c0_i32_2 = arith.constant 0 : i32
    return %c0_i32, %c0_i32_0, %c0_i32_1 : i32, i32, i32
  }
  func.func @transform_5(%arg0: i32, %arg1: i32, %arg2: i32) -> (i32, i32, i32) {
    %c0_i32 = arith.constant 0 : i32
    %c0_i32_0 = arith.constant 0 : i32
    %c0_i32_1 = arith.constant 0 : i32
    %c0_i32_2 = arith.constant 0 : i32
    return %c0_i32, %c0_i32_0, %c0_i32_1 : i32, i32, i32
  }
  func.func @transform_6(%arg0: i32, %arg1: i32, %arg2: i32) -> (i32, i32, i32) {
    %c0_i32 = arith.constant 0 : i32
    %c0_i32_0 = arith.constant 0 : i32
    %c0_i32_1 = arith.constant 0 : i32
    %c0_i32_2 = arith.constant 0 : i32
    return %c0_i32, %c0_i32_0, %c0_i32_1 : i32, i32, i32
  }
  func.func @transform_7(%arg0: i32, %arg1: i32, %arg2: i32) -> (i32, i32, i32) {
    %c0_i32 = arith.constant 0 : i32
    %c0_i32_0 = arith.constant 0 : i32
    %c0_i32_1 = arith.constant 0 : i32
    %c0_i32_2 = arith.constant 0 : i32
    return %c0_i32, %c0_i32_0, %c0_i32_1 : i32, i32, i32
  }
  func.func @transform_8(%arg0: i32, %arg1: i32, %arg2: i32) -> (i32, i32, i32) {
    %c0_i32 = arith.constant 0 : i32
    %c0_i32_0 = arith.constant 0 : i32
    %c0_i32_1 = arith.constant 0 : i32
    %c0_i32_2 = arith.constant 0 : i32
    return %c0_i32, %c0_i32_0, %c0_i32_1 : i32, i32, i32
  }
  func.func @transform_9(%arg0: i32, %arg1: i32, %arg2: i32) -> (i32, i32, i32) {
    %c0_i32 = arith.constant 0 : i32
    %c0_i32_0 = arith.constant 0 : i32
    %c0_i32_1 = arith.constant 0 : i32
    %c0_i32_2 = arith.constant 0 : i32
    return %c0_i32, %c0_i32_0, %c0_i32_1 : i32, i32, i32
  }
  func.func @transform_10(%arg0: i32, %arg1: i32, %arg2: i32) -> (i32, i32, i32) {
    %c0_i32 = arith.constant 0 : i32
    %c0_i32_0 = arith.constant 0 : i32
    %c0_i32_1 = arith.constant 0 : i32
    %c0_i32_2 = arith.constant 0 : i32
    return %c0_i32, %c0_i32_0, %c0_i32_1 : i32, i32, i32
  }
  func.func @transform_11(%arg0: i32, %arg1: i32, %arg2: i32) -> (i32, i32) {
    %c0_i32 = arith.constant 0 : i32
    %c0_i32_0 = arith.constant 0 : i32
    %c0_i32_1 = arith.constant 0 : i32
    return %c0_i32, %c0_i32_0 : i32, i32
  }
  func.func @transform_12(%arg0: i32, %arg1: i32, %arg2: i32) -> (i32, i32) {
    %c0_i32 = arith.constant 0 : i32
    %c0_i32_0 = arith.constant 0 : i32
    %c0_i32_1 = arith.constant 0 : i32
    return %c0_i32, %c0_i32_0 : i32, i32
  }
  func.func @transform_13(%arg0: i32, %arg1: i32, %arg2: i32) -> (i32, i32) {
    %c0_i32 = arith.constant 0 : i32
    %c0_i32_0 = arith.constant 0 : i32
    %c0_i32_1 = arith.constant 0 : i32
    return %c0_i32, %c0_i32_0 : i32, i32
  }
  func.func @transform_14(%arg0: i32, %arg1: i32, %arg2: i32) -> (i32, i32) {
    %c0_i32 = arith.constant 0 : i32
    %c0_i32_0 = arith.constant 0 : i32
    %c0_i32_1 = arith.constant 0 : i32
    return %c0_i32, %c0_i32_0 : i32, i32
  }
  func.func @transform_15(%arg0: i32, %arg1: i32, %arg2: i32) -> (i32, i32) {
    %c0_i32 = arith.constant 0 : i32
    %c0_i32_0 = arith.constant 0 : i32
    %c0_i32_1 = arith.constant 0 : i32
    return %c0_i32, %c0_i32_0 : i32, i32
  }
  func.func @transform_16(%arg0: i32, %arg1: i32, %arg2: i32) -> (i32, i32) {
    %c0_i32 = arith.constant 0 : i32
    %c0_i32_0 = arith.constant 0 : i32
    %c0_i32_1 = arith.constant 0 : i32
    return %c0_i32, %c0_i32_0 : i32, i32
  }
  func.func @transform_17(%arg0: i32, %arg1: i32, %arg2: i32) -> (i32, i32) {
    %c0_i32 = arith.constant 0 : i32
    %c0_i32_0 = arith.constant 0 : i32
    %c0_i32_1 = arith.constant 0 : i32
    return %c0_i32, %c0_i32_0 : i32, i32
  }
  func.func @transform_18(%arg0: i32, %arg1: i32, %arg2: i32) -> (i32, i32, i32) {
    %c0_i32 = arith.constant 0 : i32
    %c0_i32_0 = arith.constant 0 : i32
    return %arg0, %arg1, %c0_i32 : i32, i32, i32
  }
}

</mosaic_0001>

<llo_original>
// kernel: tpu_custom_call.1
$region0: #{tpu_custom_call.1}
  #allocation0 [shape = 'u32[]', space=smem, size = 0x4, offset = 0x4, fixed_abs, tag = 'smem constant byte address 0x4 - core index']
  #allocation1 [shape = 'u32[144,128]{1,0:T(1,128)}', space=vmem, size = 0x12000, scoped, tag = 'internal scratch']
  #allocation2 [shape = 'f32[2,8,16]{2,1,0:T(8,128)}', space=vmem, size = 0x2000, scoped, tag = 'scratch operand']
  #allocation3 [shape = 'f32[2,8,1]{2,1,0:T(8,128)}', space=vmem, size = 0x2000, scoped, tag = 'scratch operand']
  #allocation4 [shape = 'f32[2,8,1]{2,1,0:T(8,128)}', space=vmem, size = 0x2000, scoped, tag = 'scratch operand']
  #allocation5 [shape = 'f32[2,8,16]{2,1,0:T(8,128)}', space=vmem, size = 0x2000, scoped, tag = 'scratch operand']
  %s0 = inlined_call_operand.vmem [shape: f32[2,8,32], index: 0, kind: input, shape index: {}]
  %s1 = inlined_call_operand.vmem [shape: f32[2,8,32], index: 1, kind: input, shape index: {}]
  %s2 = inlined_call_operand.vmem [shape: f32[1,32], index: 2, kind: input, shape index: {}]
  %s3 = inlined_call_operand.vmem [shape: f32[1,32], index: 3, kind: input, shape index: {}]
  %s4 = inlined_call_operand.vmem [shape: f32[2,32,16], index: 4, kind: input, shape index: {}]
  %s5 = inlined_call_operand.vmem [shape: f32[2,1,16], index: 5, kind: input, shape index: {}]
  %s6 = inlined_call_operand.vmem [shape: f32[2,32,16], index: 6, kind: input, shape index: {}]
  %s7 = inlined_call_operand.vmem [shape: f32[2,1,16], index: 7, kind: input, shape index: {}]
  %s8 = inlined_call_operand.vmem [shape: f32[2,32,16], index: 8, kind: input, shape index: {}]
  %s9 = inlined_call_operand.vmem [shape: f32[2,1,16], index: 9, kind: input, shape index: {}]
  %s10 = inlined_call_operand.vmem [shape: f32[2,16,32], index: 10, kind: input, shape index: {}]
  %s11 = inlined_call_operand.vmem [shape: f32[1,32], index: 11, kind: input, shape index: {}]
  %s12 = inlined_call_operand.vmem [shape: f32[1,32], index: 12, kind: input, shape index: {}]
  %s13 = inlined_call_operand.vmem [shape: f32[1,32], index: 13, kind: input, shape index: {}]
  %s14 = inlined_call_operand.vmem [shape: f32[32,64], index: 14, kind: input, shape index: {}]
  %s15 = inlined_call_operand.vmem [shape: f32[1,64], index: 15, kind: input, shape index: {}]
  %s16 = inlined_call_operand.vmem [shape: f32[64,32], index: 16, kind: input, shape index: {}]
  %s17 = inlined_call_operand.vmem [shape: f32[1,32], index: 17, kind: input, shape index: {}]
  %s18 = inlined_call_operand.hbm [shape: f32[2,8,32], index: 18, kind: output, shape index: {}]
  %s19 = sld [smem:[#allocation0]]
  $region113: #{tpu_custom_call.1} parent=0
    _
  %s21 = ssub.s32 1, %s19
  %s22 = scalar_select 0, %s21, %s19
  $region1: #{tpu_custom_call.1} parent=0
    #allocation6 [shape = 'u8[8192]{0}', space=vmem, size = 0x2000, scoped, tag = 'output window, operand 0']
    #allocation7 [shape = 's32[2]{0}', space=sflag, size = 0x8, scoped, tag = 'scoped memory for tpu_custom_call.1']
    %23 = vsyncpa [#allocation7], 0
    %s24 = scalar_lea.sflag [#allocation7], 1
    %25 = vsyncpa %s24, 0
    loop: start=0, step=1, limit=4
    $region2: #{tpu_custom_call.1} parent=1 // loop_pre_header
      _
    $region3: #{tpu_custom_call.1} parent=1 // loop_header
      %s27 = sphi 0, %s31
      %p28 = scmp.ge.s32.totalorder %s27, 4
      %s34 = sphi 0, %s53
      %s35 = sphi 0, %s49
      %s36 = sphi 0, %s45
      %s37 = sphi 0, %s34
      %s38 = sphi 0, %s35
      %s39 = sphi 0, %s36
      %s40 = sphi 0, %s37
      %s41 = sphi 0, %s38
      %s42 = sphi 0, %s39
      %s58 = sphi 0, %s60
      %s61 = sphi 0, %s58
      %s62 = sphi 0, %s61
      %s78 = sphi 0, %s62
      %s86 = sphi 0, %s88
      %s89 = sphi 0, %s86
      %s90 = sphi 0, %s89
      %s106 = sphi 0, %s90
      %s110 = sphi 0, %s110
      %s112 = sphi 0, %s110
      %s113 = sphi 0, %s112
      %s127 = sphi 0, %s113
      %s131 = sphi 0, %s131
      %s133 = sphi 0, %s131
      %s134 = sphi 0, %s133
      %s148 = sphi 0, %s134
      %s152 = sphi 0, %s152
      %s154 = sphi 0, %s152
      %s155 = sphi 0, %s154
      %s169 = sphi 0, %s155
      %s173 = sphi 0, %s173
      %s175 = sphi 0, %s173
      %s176 = sphi 0, %s175
      %s190 = sphi 0, %s176
      %s194 = sphi 0, %s194
      %s196 = sphi 0, %s194
      %s197 = sphi 0, %s196
      %s211 = sphi 0, %s197
      %s215 = sphi 0, %s215
      %s217 = sphi 0, %s215
      %s218 = sphi 0, %s217
      %s232 = sphi 0, %s218
      %s236 = sphi 0, %s236
      %s238 = sphi 0, %s236
      %s239 = sphi 0, %s238
      %s253 = sphi 0, %s239
      %s257 = sphi 0, %s257
      %s259 = sphi 0, %s257
      %s260 = sphi 0, %s259
      %s274 = sphi 0, %s260
      %s278 = sphi 0, %s278
      %s280 = sphi 0, %s278
      %s281 = sphi 0, %s280
      %s295 = sphi 0, %s281
      %s299 = sphi 0, %s299
      %s301 = sphi 0, %s299
      %s302 = sphi 0, %s301
      %s316 = sphi 0, %s302
      %s320 = sphi 0, %s320
      %s322 = sphi 0, %s320
      %s323 = sphi 0, %s322
      %s337 = sphi 0, %s323
      %s341 = sphi 0, %s341
      %s343 = sphi 0, %s341
      %s344 = sphi 0, %s343
      %s358 = sphi 0, %s344
      %s362 = sphi 0, %s362
      %s364 = sphi 0, %s362
      %s365 = sphi 0, %s364
      %s379 = sphi 0, %s365
      %s383 = sphi 0, %s383
      %s385 = sphi 0, %s383
      %s386 = sphi 0, %s385
      %s400 = sphi 0, %s386
      %s404 = sphi 0, %s404
      %s406 = sphi 0, %s404
      %s407 = sphi 0, %s406
      %s421 = sphi 0, %s407
      %s425 = sphi 0, %s425
      %s427 = sphi 0, %s425
      %s428 = sphi 0, %s427
      %s442 = sphi 0, %s428
      %s450 = sphi 0, %s452
      %s453 = sphi 0, %s450
      %s454 = sphi 0, %s453
      %s470 = sphi 0, %s454
    $region4: #{tpu_custom_call.1} parent=1 // loop_header_branch
      %30 = sbr.rel (%p28) target = $region8
    $region5: #{tpu_custom_call.1} parent=1 // loop_body
      %s32 = ssub.s32 %s27, 1
      %s33 = ssub.s32 %s27, 2
      %s43 = sadd.s32 1, %s36
      %p44 = scmp.ge.s32.totalorder %s43, 1
      %s45 = scalar_select %p44, 0, %s43
      %s46 = sadd.s32 1, %s35
      %s47 = scalar_select %p44, %s46, %s35
      %p48 = scmp.ge.s32.totalorder %s47, 1
      %s49 = scalar_select %p48, 0, %s47
      %s50 = sadd.s32 1, %s34
      %s51 = scalar_select %p48, %s50, %s34
      %p52 = scmp.ge.s32.totalorder %s51, 2
      %s53 = scalar_select %p52, 0, %s51
      %s54 = ssub.s32 %s34, %s53
      %s55 = ssub.s32 %s35, %s49
      %s56 = sor.u32 %s54, %s55
      %p57 = scmp.eq.s32.totalorder %s56, 0
      %s59 = sadd.s32 %s58, 1
      %s60 = scalar_select %p57, %s58, %s59
      %p63 = pneg %p57
      %p64 = scmp.eq.s32.totalorder %s27, 1
      %p65 = por %p63, %p64
      %p66 = scmp.ne.s32.totalorder %s58, %s61
      %p67 = scmp.eq.s32.totalorder %s27, 0
      %p68 = por %p66, %p67
      %p69 = scmp.ne.s32.totalorder %s58, %s61
      %p70 = scmp.eq.s32.totalorder %s32, 1
      %p71 = por %p69, %p70
      %p72 = scmp.ne.s32.totalorder %s61, %s62
      %p73 = scmp.eq.s32.totalorder %s32, 0
      %p74 = por %p72, %p73
      %p75 = scmp.ne.s32.totalorder %s61, %s62
      %p76 = scmp.eq.s32.totalorder %s33, 1
      %p77 = por %p75, %p76
      %p79 = scmp.ne.s32.totalorder %s62, %s78
      %p80 = scmp.eq.s32.totalorder %s33, 0
      %p81 = por %p79, %p80
      %s82 = ssub.s32 %s34, %s53
      %s83 = ssub.s32 %s36, %s45
      %s84 = sor.u32 %s82, %s83
      %p85 = scmp.eq.s32.totalorder %s84, 0
      %s87 = sadd.s32 %s86, 1
      %s88 = scalar_select %p85, %s86, %s87
      %p91 = pneg %p85
      %p92 = scmp.eq.s32.totalorder %s27, 1
      %p93 = por %p91, %p92
      %p94 = scmp.ne.s32.totalorder %s86, %s89
      %p95 = scmp.eq.s32.totalorder %s27, 0
      %p96 = por %p94, %p95
      %p97 = scmp.ne.s32.totalorder %s86, %s89
      %p98 = scmp.eq.s32.totalorder %s32, 1
      %p99 = por %p97, %p98
      %p100 = scmp.ne.s32.totalorder %s89, %s90
      %p101 = scmp.eq.s32.totalorder %s32, 0
      %p102 = por %p100, %p101
      %p103 = scmp.ne.s32.totalorder %s89, %s90
      %p104 = scmp.eq.s32.totalorder %s33, 1
      %p105 = por %p103, %p104
      %p107 = scmp.ne.s32.totalorder %s90, %s106
      %p108 = scmp.eq.s32.totalorder %s33, 0
      %p109 = por %p107, %p108
      %s111 = sadd.s32 %s110, 1
      %p114 = scmp.eq.s32.totalorder %s27, 1
      %p115 = scmp.ne.s32.totalorder %s110, %s112
      %p116 = scmp.eq.s32.totalorder %s27, 0
      %p117 = por %p115, %p116
      %p118 = scmp.ne.s32.totalorder %s110, %s112
      %p119 = scmp.eq.s32.totalorder %s32, 1
      %p120 = por %p118, %p119
      %p121 = scmp.ne.s32.totalorder %s112, %s113
      %p122 = scmp.eq.s32.totalorder %s32, 0
      %p123 = por %p121, %p122
      %p124 = scmp.ne.s32.totalorder %s112, %s113
      %p125 = scmp.eq.s32.totalorder %s33, 1
      %p126 = por %p124, %p125
      %p128 = scmp.ne.s32.totalorder %s113, %s127
      %p129 = scmp.eq.s32.totalorder %s33, 0
      %p130 = por %p128, %p129
      %s132 = sadd.s32 %s131, 1
      %p135 = scmp.eq.s32.totalorder %s27, 1
      %p136 = scmp.ne.s32.totalorder %s131, %s133
      %p137 = scmp.eq.s32.totalorder %s27, 0
      %p138 = por %p136, %p137
      %p139 = scmp.ne.s32.totalorder %s131, %s133
      %p140 = scmp.eq.s32.totalorder %s32, 1
      %p141 = por %p139, %p140
      %p142 = scmp.ne.s32.totalorder %s133, %s134
      %p143 = scmp.eq.s32.totalorder %s32, 0
      %p144 = por %p142, %p143
      %p145 = scmp.ne.s32.totalorder %s133, %s134
      %p146 = scmp.eq.s32.totalorder %s33, 1
      %p147 = por %p145, %p146
      %p149 = scmp.ne.s32.totalorder %s134, %s148
      %p150 = scmp.eq.s32.totalorder %s33, 0
      %p151 = por %p149, %p150
      %s153 = sadd.s32 %s152, 1
      %p156 = scmp.eq.s32.totalorder %s27, 1
      %p157 = scmp.ne.s32.totalorder %s152, %s154
      %p158 = scmp.eq.s32.totalorder %s27, 0
      %p159 = por %p157, %p158
      %p160 = scmp.ne.s32.totalorder %s152, %s154
      %p161 = scmp.eq.s32.totalorder %s32, 1
      %p162 = por %p160, %p161
      %p163 = scmp.ne.s32.totalorder %s154, %s155
      %p164 = scmp.eq.s32.totalorder %s32, 0
      %p165 = por %p163, %p164
      %p166 = scmp.ne.s32.totalorder %s154, %s155
      %p167 = scmp.eq.s32.totalorder %s33, 1
      %p168 = por %p166, %p167
      %p170 = scmp.ne.s32.totalorder %s155, %s169
      %p171 = scmp.eq.s32.totalorder %s33, 0
      %p172 = por %p170, %p171
      %s174 = sadd.s32 %s173, 1
      %p177 = scmp.eq.s32.totalorder %s27, 1
      %p178 = scmp.ne.s32.totalorder %s173, %s175
      %p179 = scmp.eq.s32.totalorder %s27, 0
      %p180 = por %p178, %p179
      %p181 = scmp.ne.s32.totalorder %s173, %s175
      %p182 = scmp.eq.s32.totalorder %s32, 1
      %p183 = por %p181, %p182
      %p184 = scmp.ne.s32.totalorder %s175, %s176
      %p185 = scmp.eq.s32.totalorder %s32, 0
      %p186 = por %p184, %p185
      %p187 = scmp.ne.s32.totalorder %s175, %s176
      %p188 = scmp.eq.s32.totalorder %s33, 1
      %p189 = por %p187, %p188
      %p191 = scmp.ne.s32.totalorder %s176, %s190
      %p192 = scmp.eq.s32.totalorder %s33, 0
      %p193 = por %p191, %p192
      %s195 = sadd.s32 %s194, 1
      %p198 = scmp.eq.s32.totalorder %s27, 1
      %p199 = scmp.ne.s32.totalorder %s194, %s196
      %p200 = scmp.eq.s32.totalorder %s27, 0
      %p201 = por %p199, %p200
      %p202 = scmp.ne.s32.totalorder %s194, %s196
      %p203 = scmp.eq.s32.totalorder %s32, 1
      %p204 = por %p202, %p203
      %p205 = scmp.ne.s32.totalorder %s196, %s197
      %p206 = scmp.eq.s32.totalorder %s32, 0
      %p207 = por %p205, %p206
      %p208 = scmp.ne.s32.totalorder %s196, %s197
      %p209 = scmp.eq.s32.totalorder %s33, 1
      %p210 = por %p208, %p209
      %p212 = scmp.ne.s32.totalorder %s197, %s211
      %p213 = scmp.eq.s32.totalorder %s33, 0
      %p214 = por %p212, %p213
      %s216 = sadd.s32 %s215, 1
      %p219 = scmp.eq.s32.totalorder %s27, 1
      %p220 = scmp.ne.s32.totalorder %s215, %s217
      %p221 = scmp.eq.s32.totalorder %s27, 0
      %p222 = por %p220, %p221
      %p223 = scmp.ne.s32.totalorder %s215, %s217
      %p224 = scmp.eq.s32.totalorder %s32, 1
      %p225 = por %p223, %p224
      %p226 = scmp.ne.s32.totalorder %s217, %s218
      %p227 = scmp.eq.s32.totalorder %s32, 0
      %p228 = por %p226, %p227
      %p229 = scmp.ne.s32.totalorder %s217, %s218
      %p230 = scmp.eq.s32.totalorder %s33, 1
      %p231 = por %p229, %p230
      %p233 = scmp.ne.s32.totalorder %s218, %s232
      %p234 = scmp.eq.s32.totalorder %s33, 0
      %p235 = por %p233, %p234
      %s237 = sadd.s32 %s236, 1
      %p240 = scmp.eq.s32.totalorder %s27, 1
      %p241 = scmp.ne.s32.totalorder %s236, %s238
      %p242 = scmp.eq.s32.totalorder %s27, 0
      %p243 = por %p241, %p242
      %p244 = scmp.ne.s32.totalorder %s236, %s238
      %p245 = scmp.eq.s32.totalorder %s32, 1
      %p246 = por %p244, %p245
      %p247 = scmp.ne.s32.totalorder %s238, %s239
      %p248 = scmp.eq.s32.totalorder %s32, 0
      %p249 = por %p247, %p248
      %p250 = scmp.ne.s32.totalorder %s238, %s239
      %p251 = scmp.eq.s32.totalorder %s33, 1
      %p252 = por %p250, %p251
      %p254 = scmp.ne.s32.totalorder %s239, %s253
      %p255 = scmp.eq.s32.totalorder %s33, 0
      %p256 = por %p254, %p255
      %s258 = sadd.s32 %s257, 1
      %p261 = scmp.eq.s32.totalorder %s27, 1
      %p262 = scmp.ne.s32.totalorder %s257, %s259
      %p263 = scmp.eq.s32.totalorder %s27, 0
      %p264 = por %p262, %p263
      %p265 = scmp.ne.s32.totalorder %s257, %s259
      %p266 = scmp.eq.s32.totalorder %s32, 1
      %p267 = por %p265, %p266
      %p268 = scmp.ne.s32.totalorder %s259, %s260
      %p269 = scmp.eq.s32.totalorder %s32, 0
      %p270 = por %p268, %p269
      %p271 = scmp.ne.s32.totalorder %s259, %s260
      %p272 = scmp.eq.s32.totalorder %s33, 1
      %p273 = por %p271, %p272
      %p275 = scmp.ne.s32.totalorder %s260, %s274
      %p276 = scmp.eq.s32.totalorder %s33, 0
      %p277 = por %p275, %p276
      %s279 = sadd.s32 %s278, 1
      %p282 = scmp.eq.s32.totalorder %s27, 1
      %p283 = scmp.ne.s32.totalorder %s278, %s280
      %p284 = scmp.eq.s32.totalorder %s27, 0
      %p285 = por %p283, %p284
      %p286 = scmp.ne.s32.totalorder %s278, %s280
      %p287 = scmp.eq.s32.totalorder %s32, 1
      %p288 = por %p286, %p287
      %p289 = scmp.ne.s32.totalorder %s280, %s281
      %p290 = scmp.eq.s32.totalorder %s32, 0
      %p291 = por %p289, %p290
      %p292 = scmp.ne.s32.totalorder %s280, %s281
      %p293 = scmp.eq.s32.totalorder %s33, 1
      %p294 = por %p292, %p293
      %p296 = scmp.ne.s32.totalorder %s281, %s295
      %p297 = scmp.eq.s32.totalorder %s33, 0
      %p298 = por %p296, %p297
      %s300 = sadd.s32 %s299, 1
      %p303 = scmp.eq.s32.totalorder %s27, 1
      %p304 = scmp.ne.s32.totalorder %s299, %s301
      %p305 = scmp.eq.s32.totalorder %s27, 0
      %p306 = por %p304, %p305
      %p307 = scmp.ne.s32.totalorder %s299, %s301
      %p308 = scmp.eq.s32.totalorder %s32, 1
      %p309 = por %p307, %p308
      %p310 = scmp.ne.s32.totalorder %s301, %s302
      %p311 = scmp.eq.s32.totalorder %s32, 0
      %p312 = por %p310, %p311
      %p313 = scmp.ne.s32.totalorder %s301, %s302
      %p314 = scmp.eq.s32.totalorder %s33, 1
      %p315 = por %p313, %p314
      %p317 = scmp.ne.s32.totalorder %s302, %s316
      %p318 = scmp.eq.s32.totalorder %s33, 0
      %p319 = por %p317, %p318
      %s321 = sadd.s32 %s320, 1
      %p324 = scmp.eq.s32.totalorder %s27, 1
      %p325 = scmp.ne.s32.totalorder %s320, %s322
      %p326 = scmp.eq.s32.totalorder %s27, 0
      %p327 = por %p325, %p326
      %p328 = scmp.ne.s32.totalorder %s320, %s322
      %p329 = scmp.eq.s32.totalorder %s32, 1
      %p330 = por %p328, %p329
      %p331 = scmp.ne.s32.totalorder %s322, %s323
      %p332 = scmp.eq.s32.totalorder %s32, 0
      %p333 = por %p331, %p332
      %p334 = scmp.ne.s32.totalorder %s322, %s323
      %p335 = scmp.eq.s32.totalorder %s33, 1
      %p336 = por %p334, %p335
      %p338 = scmp.ne.s32.totalorder %s323, %s337
      %p339 = scmp.eq.s32.totalorder %s33, 0
      %p340 = por %p338, %p339
      %s342 = sadd.s32 %s341, 1
      %p345 = scmp.eq.s32.totalorder %s27, 1
      %p346 = scmp.ne.s32.totalorder %s341, %s343
      %p347 = scmp.eq.s32.totalorder %s27, 0
      %p348 = por %p346, %p347
      %p349 = scmp.ne.s32.totalorder %s341, %s343
      %p350 = scmp.eq.s32.totalorder %s32, 1
      %p351 = por %p349, %p350
      %p352 = scmp.ne.s32.totalorder %s343, %s344
      %p353 = scmp.eq.s32.totalorder %s32, 0
      %p354 = por %p352, %p353
      %p355 = scmp.ne.s32.totalorder %s343, %s344
      %p356 = scmp.eq.s32.totalorder %s33, 1
      %p357 = por %p355, %p356
      %p359 = scmp.ne.s32.totalorder %s344, %s358
      %p360 = scmp.eq.s32.totalorder %s33, 0
      %p361 = por %p359, %p360
      %s363 = sadd.s32 %s362, 1
      %p366 = scmp.eq.s32.totalorder %s27, 1
      %p367 = scmp.ne.s32.totalorder %s362, %s364
      %p368 = scmp.eq.s32.totalorder %s27, 0
      %p369 = por %p367, %p368
      %p370 = scmp.ne.s32.totalorder %s362, %s364
      %p371 = scmp.eq.s32.totalorder %s32, 1
      %p372 = por %p370, %p371
      %p373 = scmp.ne.s32.totalorder %s364, %s365
      %p374 = scmp.eq.s32.totalorder %s32, 0
      %p375 = por %p373, %p374
      %p376 = scmp.ne.s32.totalorder %s364, %s365
      %p377 = scmp.eq.s32.totalorder %s33, 1
      %p378 = por %p376, %p377
      %p380 = scmp.ne.s32.totalorder %s365, %s379
      %p381 = scmp.eq.s32.totalorder %s33, 0
      %p382 = por %p380, %p381
      %s384 = sadd.s32 %s383, 1
      %p387 = scmp.eq.s32.totalorder %s27, 1
      %p388 = scmp.ne.s32.totalorder %s383, %s385
      %p389 = scmp.eq.s32.totalorder %s27, 0
      %p390 = por %p388, %p389
      %p391 = scmp.ne.s32.totalorder %s383, %s385
      %p392 = scmp.eq.s32.totalorder %s32, 1
      %p393 = por %p391, %p392
      %p394 = scmp.ne.s32.totalorder %s385, %s386
      %p395 = scmp.eq.s32.totalorder %s32, 0
      %p396 = por %p394, %p395
      %p397 = scmp.ne.s32.totalorder %s385, %s386
      %p398 = scmp.eq.s32.totalorder %s33, 1
      %p399 = por %p397, %p398
      %p401 = scmp.ne.s32.totalorder %s386, %s400
      %p402 = scmp.eq.s32.totalorder %s33, 0
      %p403 = por %p401, %p402
      %s405 = sadd.s32 %s404, 1
      %p408 = scmp.eq.s32.totalorder %s27, 1
      %p409 = scmp.ne.s32.totalorder %s404, %s406
      %p410 = scmp.eq.s32.totalorder %s27, 0
      %p411 = por %p409, %p410
      %p412 = scmp.ne.s32.totalorder %s404, %s406
      %p413 = scmp.eq.s32.totalorder %s32, 1
      %p414 = por %p412, %p413
      %p415 = scmp.ne.s32.totalorder %s406, %s407
      %p416 = scmp.eq.s32.totalorder %s32, 0
      %p417 = por %p415, %p416
      %p418 = scmp.ne.s32.totalorder %s406, %s407
      %p419 = scmp.eq.s32.totalorder %s33, 1
      %p420 = por %p418, %p419
      %p422 = scmp.ne.s32.totalorder %s407, %s421
      %p423 = scmp.eq.s32.totalorder %s33, 0
      %p424 = por %p422, %p423
      %s426 = sadd.s32 %s425, 1
      %p429 = scmp.eq.s32.totalorder %s27, 1
      %p430 = scmp.ne.s32.totalorder %s425, %s427
      %p431 = scmp.eq.s32.totalorder %s27, 0
      %p432 = por %p430, %p431
      %p433 = scmp.ne.s32.totalorder %s425, %s427
      %p434 = scmp.eq.s32.totalorder %s32, 1
      %p435 = por %p433, %p434
      %p436 = scmp.ne.s32.totalorder %s427, %s428
      %p437 = scmp.eq.s32.totalorder %s32, 0
      %p438 = por %p436, %p437
      %p439 = scmp.ne.s32.totalorder %s427, %s428
      %p440 = scmp.eq.s32.totalorder %s33, 1
      %p441 = por %p439, %p440
      %p443 = scmp.ne.s32.totalorder %s428, %s442
      %p444 = scmp.eq.s32.totalorder %s33, 0
      %p445 = por %p443, %p444
      %s446 = ssub.s32 %s34, %s53
      %s447 = ssub.s32 %s35, %s49
      %s448 = sor.u32 %s446, %s447
      %p449 = scmp.eq.s32.totalorder %s448, 0
      %s451 = sadd.s32 %s450, 1
      %s452 = scalar_select %p449, %s450, %s451
      %p455 = pneg %p449
      %p456 = scmp.eq.s32.totalorder %s27, 1
      %p457 = por %p455, %p456
      %p458 = scmp.ne.s32.totalorder %s450, %s453
      %p459 = scmp.eq.s32.totalorder %s27, 0
      %p460 = por %p458, %p459
      %p461 = scmp.ne.s32.totalorder %s450, %s453
      %p462 = scmp.eq.s32.totalorder %s32, 1
      %p463 = por %p461, %p462
      %p464 = scmp.ne.s32.totalorder %s453, %s454
      %p465 = scmp.eq.s32.totalorder %s32, 0
      %p466 = por %p464, %p465
      %p467 = scmp.ne.s32.totalorder %s453, %s454
      %p468 = scmp.eq.s32.totalorder %s33, 1
      %p469 = por %p467, %p468
      %p471 = scmp.ne.s32.totalorder %s454, %s470
      %p472 = scmp.eq.s32.totalorder %s33, 0
      %p473 = por %p471, %p472
      %p474 = scmp.le.s32.totalorder 1, %s27
      %p475 = scmp.lt.s32.totalorder %s27, 3
      %p476 = pnand %p474, %p475
      %p477 = pneg %p476
      // Predicated region
      $region9: #{tpu_custom_call.1} parent=5 // pred_check
        _
      $region10: #{tpu_custom_call.1} parent=5 // pred_check_branch
        %479 = sbr.rel (%p476) target = $region12
      $region11: #{tpu_custom_call.1} parent=5 // pred_region
        %s480 = ssub.s32 %s27, 1
        // Predicated region
        $region13: #{tpu_custom_call.1} parent=11 // pred_check
          %p481 = pneg %p123
        $region14: #{tpu_custom_call.1} parent=11 // pred_check_branch
          %483 = sbr.rel (%p481) target = $region16
        $region15: #{tpu_custom_call.1} parent=11 // pred_region
          _
        $region16: #{tpu_custom_call.1} parent=11 // pred_fallthru
          _
        // Predicated region
        $region17: #{tpu_custom_call.1} parent=11 // pred_check
          %p484 = pneg %p144
        $region18: #{tpu_custom_call.1} parent=11 // pred_check_branch
          %486 = sbr.rel (%p484) target = $region20
        $region19: #{tpu_custom_call.1} parent=11 // pred_region
          _
        $region20: #{tpu_custom_call.1} parent=11 // pred_fallthru
          _
        // Predicated region
        $region21: #{tpu_custom_call.1} parent=11 // pred_check
          %p487 = pneg %p165
        $region22: #{tpu_custom_call.1} parent=11 // pred_check_branch
          %489 = sbr.rel (%p487) target = $region24
        $region23: #{tpu_custom_call.1} parent=11 // pred_region
          _
        $region24: #{tpu_custom_call.1} parent=11 // pred_fallthru
          _
        // Predicated region
        $region25: #{tpu_custom_call.1} parent=11 // pred_check
          %p490 = pneg %p186
        $region26: #{tpu_custom_call.1} parent=11 // pred_check_branch
          %492 = sbr.rel (%p490) target = $region28
        $region27: #{tpu_custom_call.1} parent=11 // pred_region
          _
        $region28: #{tpu_custom_call.1} parent=11 // pred_fallthru
          _
        // Predicated region
        $region29: #{tpu_custom_call.1} parent=11 // pred_check
          %p493 = pneg %p207
        $region30: #{tpu_custom_call.1} parent=11 // pred_check_branch
          %495 = sbr.rel (%p493) target = $region32
        $region31: #{tpu_custom_call.1} parent=11 // pred_region
          _
        $region32: #{tpu_custom_call.1} parent=11 // pred_fallthru
          _
        // Predicated region
        $region33: #{tpu_custom_call.1} parent=11 // pred_check
          %p496 = pneg %p228
        $region34: #{tpu_custom_call.1} parent=11 // pred_check_branch
          %498 = sbr.rel (%p496) target = $region36
        $region35: #{tpu_custom_call.1} parent=11 // pred_region
          _
        $region36: #{tpu_custom_call.1} parent=11 // pred_fallthru
          _
        // Predicated region
        $region37: #{tpu_custom_call.1} parent=11 // pred_check
          %p499 = pneg %p249
        $region38: #{tpu_custom_call.1} parent=11 // pred_check_branch
          %501 = sbr.rel (%p499) target = $region40
        $region39: #{tpu_custom_call.1} parent=11 // pred_region
          _
        $region40: #{tpu_custom_call.1} parent=11 // pred_fallthru
          _
        // Predicated region
        $region41: #{tpu_custom_call.1} parent=11 // pred_check
          %p502 = pneg %p270
        $region42: #{tpu_custom_call.1} parent=11 // pred_check_branch
          %504 = sbr.rel (%p502) target = $region44
        $region43: #{tpu_custom_call.1} parent=11 // pred_region
          _
        $region44: #{tpu_custom_call.1} parent=11 // pred_fallthru
          _
        // Predicated region
        $region45: #{tpu_custom_call.1} parent=11 // pred_check
          %p505 = pneg %p291
        $region46: #{tpu_custom_call.1} parent=11 // pred_check_branch
          %507 = sbr.rel (%p505) target = $region48
        $region47: #{tpu_custom_call.1} parent=11 // pred_region
          _
        $region48: #{tpu_custom_call.1} parent=11 // pred_fallthru
          _
        // Predicated region
        $region49: #{tpu_custom_call.1} parent=11 // pred_check
          %p508 = pneg %p312
        $region50: #{tpu_custom_call.1} parent=11 // pred_check_branch
          %510 = sbr.rel (%p508) target = $region52
        $region51: #{tpu_custom_call.1} parent=11 // pred_region
          _
        $region52: #{tpu_custom_call.1} parent=11 // pred_fallthru
          _
        // Predicated region
        $region53: #{tpu_custom_call.1} parent=11 // pred_check
          %p511 = pneg %p333
        $region54: #{tpu_custom_call.1} parent=11 // pred_check_branch
          %513 = sbr.rel (%p511) target = $region56
        $region55: #{tpu_custom_call.1} parent=11 // pred_region
          _
        $region56: #{tpu_custom_call.1} parent=11 // pred_fallthru
          _
        // Predicated region
        $region57: #{tpu_custom_call.1} parent=11 // pred_check
          %p514 = pneg %p354
        $region58: #{tpu_custom_call.1} parent=11 // pred_check_branch
          %516 = sbr.rel (%p514) target = $region60
        $region59: #{tpu_custom_call.1} parent=11 // pred_region
          _
        $region60: #{tpu_custom_call.1} parent=11 // pred_fallthru
          _
        // Predicated region
        $region61: #{tpu_custom_call.1} parent=11 // pred_check
          %p517 = pneg %p375
        $region62: #{tpu_custom_call.1} parent=11 // pred_check_branch
          %519 = sbr.rel (%p517) target = $region64
        $region63: #{tpu_custom_call.1} parent=11 // pred_region
          _
        $region64: #{tpu_custom_call.1} parent=11 // pred_fallthru
          _
        // Predicated region
        $region65: #{tpu_custom_call.1} parent=11 // pred_check
          %p520 = pneg %p396
        $region66: #{tpu_custom_call.1} parent=11 // pred_check_branch
          %522 = sbr.rel (%p520) target = $region68
        $region67: #{tpu_custom_call.1} parent=11 // pred_region
          _
        $region68: #{tpu_custom_call.1} parent=11 // pred_fallthru
          _
        // Predicated region
        $region69: #{tpu_custom_call.1} parent=11 // pred_check
          %p523 = pneg %p417
        $region70: #{tpu_custom_call.1} parent=11 // pred_check_branch
          %525 = sbr.rel (%p523) target = $region72
        $region71: #{tpu_custom_call.1} parent=11 // pred_region
          _
        $region72: #{tpu_custom_call.1} parent=11 // pred_fallthru
          _
        // Predicated region
        $region73: #{tpu_custom_call.1} parent=11 // pred_check
          %p526 = pneg %p438
        $region74: #{tpu_custom_call.1} parent=11 // pred_check_branch
          %528 = sbr.rel (%p526) target = $region76
        $region75: #{tpu_custom_call.1} parent=11 // pred_region
          _
        $region76: #{tpu_custom_call.1} parent=11 // pred_fallthru
          _
      $region12: #{tpu_custom_call.1} parent=5 // pred_fallthru
        _
      %p529 = scmp.lt.s32.totalorder %s27, 2
      // Predicated region
      $region77: #{tpu_custom_call.1} parent=5 // pred_check
        %p530 = pneg %p529
      $region78: #{tpu_custom_call.1} parent=5 // pred_check_branch
        %532 = sbr.rel (%p530) target = $region80
      $region79: #{tpu_custom_call.1} parent=5 // pred_region
        // Predicated region
        $region81: #{tpu_custom_call.1} parent=79 // pred_check
          %p533 = pneg %p68
        $region82: #{tpu_custom_call.1} parent=79 // pred_check_branch
          %535 = sbr.rel (%p533) target = $region84
        $region83: #{tpu_custom_call.1} parent=79 // pred_region
          %p536 = scmp.lt.s32.totalorder %s34, 1
          %s537 = scalar_select %p536, %s34, 1
          %p538 = scmp.lt.s32.totalorder %s35, 0
          %s539 = scalar_select %p538, %s35, 0
          %s540 = sadd.s32 %s539, %s537
          %s541 = smul.addr %s540, 8
          %s542 = scalar_lea.vmem %s0, %s541
        $region84: #{tpu_custom_call.1} parent=79 // pred_fallthru
          _
        // Predicated region
        $region85: #{tpu_custom_call.1} parent=79 // pred_check
          %p543 = pneg %p96
        $region86: #{tpu_custom_call.1} parent=79 // pred_check_branch
          %545 = sbr.rel (%p543) target = $region88
        $region87: #{tpu_custom_call.1} parent=79 // pred_region
          %p546 = scmp.lt.s32.totalorder %s34, 1
          %s547 = scalar_select %p546, %s34, 1
          %p548 = scmp.lt.s32.totalorder %s36, 0
          %s549 = scalar_select %p548, %s36, 0
          %s550 = sadd.s32 %s549, %s547
          %s551 = smul.addr %s550, 8
          %s552 = scalar_lea.vmem %s1, %s551
        $region88: #{tpu_custom_call.1} parent=79 // pred_fallthru
          _
      $region80: #{tpu_custom_call.1} parent=5 // pred_fallthru
        _
      %p553 = scmp.le.s32.totalorder 1, %s27
      %p554 = scmp.lt.s32.totalorder %s27, 3
      %p555 = pnand %p553, %p554
      %p556 = pneg %p555
      // Predicated region
      $region89: #{tpu_custom_call.1} parent=5 // pred_check
        _
      $region90: #{tpu_custom_call.1} parent=5 // pred_check_branch
        %558 = sbr.rel (%p555) target = $region92
      $region91: #{tpu_custom_call.1} parent=5 // pred_region
        %s559 = ssub.s32 %s27, 1
        %p560 = scmp.lt.s32.totalorder %s37, 1
        %s561 = scalar_select %p560, %s37, 1
        %p562 = scmp.lt.s32.totalorder %s38, 0
        %s563 = scalar_select %p562, %s38, 0
        %s564 = sadd.s32 %s563, %s561
        %s565 = smul.addr %s564, 8
        %s566 = scalar_lea.vmem %s0, %s565
        %p567 = pneg %p74
        %p568 = pneg %p71
        %p569 = scmp.lt.s32.totalorder %s37, 1
        %s570 = scalar_select %p569, %s37, 1
        %p571 = scmp.lt.s32.totalorder %s39, 0
        %s572 = scalar_select %p571, %s39, 0
        %s573 = sadd.s32 %s572, %s570
        %s574 = smul.addr %s573, 8
        %s575 = scalar_lea.vmem %s1, %s574
        %p576 = pneg %p102
        %p577 = pneg %p99
        %p578 = pneg %p123
        %p579 = pneg %p120
        %p580 = pneg %p144
        %p581 = pneg %p141
        %p582 = pneg %p165
        %p583 = pneg %p162
        %p584 = pneg %p186
        %p585 = pneg %p183
        %p586 = pneg %p207
        %p587 = pneg %p204
        %p588 = pneg %p228
        %p589 = pneg %p225
        %p590 = pneg %p249
        %p591 = pneg %p246
        %p592 = pneg %p270
        %p593 = pneg %p267
        %p594 = pneg %p291
        %p595 = pneg %p288
        %p596 = pneg %p312
        %p597 = pneg %p309
        %p598 = pneg %p333
        %p599 = pneg %p330
        %p600 = pneg %p354
        %p601 = pneg %p351
        %p602 = pneg %p375
        %p603 = pneg %p372
        %p604 = pneg %p396
        %p605 = pneg %p393
        %p606 = pneg %p417
        %p607 = pneg %p414
        %p608 = pneg %p438
        %p609 = pneg %p435
        %p610 = pneg %p466
        %p611 = pneg %p463
        %s612 = sand.u32 %s453, 1
        %s613 = scalar_lea.sflag [#allocation7], %s612
        %s614 = sand.u32 %s453, 1
        %s615 = smul.addr %s614, 8
        %s616 = scalar_lea.vmem [#allocation6], %s615
        %p617 = scmp.lt.s32.totalorder %s37, 1
        %s618 = scalar_select %p617, %s37, 1
        %p619 = scmp.lt.s32.totalorder %s38, 0
        %s620 = scalar_select %p619, %s38, 0
        %s621 = sadd.s32 %s620, %s618
        %s622 = smul.addr %s621, 8
        %s623 = scalar_lea.vmem %s0, %s622
        %p624 = scmp.lt.s32.totalorder %s37, 1
        %s625 = scalar_select %p624, %s37, 1
        %p626 = scmp.lt.s32.totalorder %s39, 0
        %s627 = scalar_select %p626, %s39, 0
        %s628 = sadd.s32 %s627, %s625
        %s629 = smul.addr %s628, 8
        %s630 = scalar_lea.vmem %s1, %s629
        %p631 = scmp.eq.s32.totalorder %s39, 0
        // Predicated region
        $region93: #{tpu_custom_call.1} parent=91 // pred_check
          %p632 = pneg %p631
        $region94: #{tpu_custom_call.1} parent=91 // pred_check_branch
          %634 = sbr.rel (%p632) target = $region96
        $region95: #{tpu_custom_call.1} parent=91 // pred_region
          %v635 = vld [vmem:[%s623] sm:$0xff]
          %v636 = vld [vmem:[%s2] sm:$0x1]
          %v637 = vld [vmem:[%s3] sm:$0x1]
          %vm638 = vcmask 261120
          %v639 = vsel %vm638, %v635, 0.0
          %640 = vadd.xlane.f32.xlu0 %v639
          %v641 = vpop.xlane.xlu0 %640
          %v642 = vrcp.pop 32.0
          %v643 = vmul.f32 %v641, %v642
          %v644 = vsub.f32 %v635, %v643
          %v645 = vmul.f32 %v644, %v644
          %v646 = vsel %vm638, %v645, 0.0
          %647 = vadd.xlane.f32.xlu0 %v646
          %v648 = vpop.xlane.xlu0 %647
          %v649 = vmul.f32 %v648, %v642
          %v650 = vadd.f32 %v649, 1e-05
          %v651 = vrsqrt.pop %v650
          %v652 = vmul.f32 %v644, %v651
          %v654 = vlaneseq
          %v655 = vshrl.u32 %v654, 7
          %v656 = vsub.s32 0, %v655
          %v657 = vrot.slane %v636, %v656
          %v659 = vmul.f32 %v652, %v657
          %v661 = vlaneseq
          %v662 = vshrl.u32 %v661, 7
          %v663 = vsub.s32 0, %v662
          %v664 = vrot.slane %v637, %v663
          %v666 = vadd.f32 %v659, %v664
          %v667 = vld [vmem:[%s4] sm:$0xff]
          %v668 = vld [vmem:[%s4 + $0x8] sm:$0xff]
          %v669 = vld [vmem:[%s4 + $0x10] sm:$0xff]
          %v670 = vld [vmem:[%s4 + $0x18] sm:$0xff]
          %v671 = vld [vmem:[%s5] sm:$0x1]
          %v673 = vlaneseq
          %v674 = vshrl.u32 %v673, 7
          %v675 = vsub.s32 0, %v674
          %v676 = vrot.slane %v671, %v675
          %v679 = vsel %vm638, %v666, 0
          %681 = vmatprep.subr.mxu0 0.0
          %682 = vmatpush1.msra.mxu0 %v667
          %683 = vmatprep.subr.mxu0 0.0
          %684 = vmatpush1.msra.mxu0 %v668
          %685 = vmatprep.subr.mxu0 0.0
          %686 = vmatpush1.msra.mxu0 %v669
          %687 = vmatprep.subr.mxu0 0.0
          %688 = vmatpush1.msra.mxu0 %v670
          %689 = vmatprep.subr.mxu0 0.0
          %690 = vmatpush1.msra.mxu0 0.0
          %691 = vmatprep.subr.mxu0 0.0
          %692 = vmatpush1.msra.mxu0 0.0
          %693 = vmatprep.subr.mxu0 0.0
          %694 = vmatpush1.msra.mxu0 0.0
          %695 = vmatprep.subr.mxu0 0.0
          %696 = vmatpush1.msra.mxu0 0.0
          %697 = vmatprep.subr.mxu0 0.0
          %698 = vmatpush1.msra.mxu0 0.0
          %699 = vmatprep.subr.mxu0 0.0
          %700 = vmatpush1.msra.mxu0 0.0
          %701 = vmatprep.subr.mxu0 0.0
          %702 = vmatpush1.msra.mxu0 0.0
          %703 = vmatprep.subr.mxu0 0.0
          %704 = vmatpush1.msra.mxu0 0.0
          %705 = vmatprep.subr.mxu0 0.0
          %706 = vmatpush1.msra.mxu0 0.0
          %707 = vmatprep.subr.mxu0 0.0
          %708 = vmatpush1.msra.mxu0 0.0
          %709 = vmatprep.subr.mxu0 0.0
          %710 = vmatpush1.msra.mxu0 0.0
          %711 = vmatprep.subr.mxu0 0.0
          %712 = vmatpush1.msra.mxu0 0.0
          %713 = vmatprep.subr.mxu0 0.0
          %714 = vmatpush1.msra.mxu0 0.0
          %715 = vmatprep.subr.mxu0 0.0
          %716 = vmatpush1.msra.mxu0 0.0
          %717 = vmatprep.subr.mxu0 0.0
          %718 = vmatpush1.msra.mxu0 0.0
          %719 = vmatprep.subr.mxu0 0.0
          %720 = vmatpush1.msra.mxu0 0.0
          %721 = vmatprep.subr.mxu0 0.0
          %722 = vmatpush1.msra.mxu0 0.0
          %723 = vmatprep.subr.mxu0 0.0
          %724 = vmatpush1.msra.mxu0 0.0
          %725 = vmatprep.subr.mxu0 0.0
          %726 = vmatpush1.msra.mxu0 0.0
          %727 = vmatprep.subr.mxu0 0.0
          %728 = vmatpush1.msra.mxu0 0.0
          %729 = vmatprep.subr.mxu0 0.0
          %730 = vmatpush1.msra.mxu0 0.0
          %731 = vmatprep.subr.mxu0 0.0
          %732 = vmatpush1.msra.mxu0 0.0
          %733 = vmatprep.subr.mxu0 0.0
          %734 = vmatpush1.msra.mxu0 0.0
          %735 = vmatprep.subr.mxu0 0.0
          %736 = vmatpush1.msra.mxu0 0.0
          %737 = vmatprep.subr.mxu0 0.0
          %738 = vmatpush1.msra.mxu0 0.0
          %739 = vmatprep.subr.mxu0 0.0
          %740 = vmatpush1.msra.mxu0 0.0
          %741 = vmatprep.subr.mxu0 0.0
          %742 = vmatpush1.msra.mxu0 0.0
          %743 = vmatprep.subr.mxu0 0.0
          %744 = vmatpush1.msra.mxu0 0.0
          %745 = vmatprep.mubr.f32.mxu0 0.0
          %746 = vmatmul.mubr.f32.gmra.mrb[0].mxu0 %v679
          %v747 = vpop.f32.mrb[0].mxu0
          %v748 = vadd.f32 %v676, %v747
          %v749 = vpop.f32.mrb[0].mxu0
          %750 = vdwg.mxu0
          %v751 = vmul.f32 %v748, 0.25
          %vm752 = vcmask 130048
          %753 = vst.msk [vmem:[#allocation2] sm:$0xff] %vm752, %v751
          %s754 = scalar_lea.vmem %s4, 32
          %v755 = vld [vmem:[%s754] sm:$0xff]
          %v756 = vld [vmem:[%s754 + $0x8] sm:$0xff]
          %v757 = vld [vmem:[%s754 + $0x10] sm:$0xff]
          %v758 = vld [vmem:[%s754 + $0x18] sm:$0xff]
          %s759 = scalar_lea.vmem %s5, 1
          %v760 = vld [vmem:[%s759] sm:$0x1]
          %v762 = vlaneseq
          %v763 = vshrl.u32 %v762, 7
          %v764 = vsub.s32 0, %v763
          %v765 = vrot.slane %v760, %v764
          %767 = vmatprep.subr.mxu0 0.0
          %768 = vmatpush1.msra.mxu0 %v755
          %769 = vmatprep.subr.mxu0 0.0
          %770 = vmatpush1.msra.mxu0 %v756
          %771 = vmatprep.subr.mxu0 0.0
          %772 = vmatpush1.msra.mxu0 %v757
          %773 = vmatprep.subr.mxu0 0.0
          %774 = vmatpush1.msra.mxu0 %v758
          %775 = vmatprep.subr.mxu0 0.0
          %776 = vmatpush1.msra.mxu0 0.0
          %777 = vmatprep.subr.mxu0 0.0
          %778 = vmatpush1.msra.mxu0 0.0
          %779 = vmatprep.subr.mxu0 0.0
          %780 = vmatpush1.msra.mxu0 0.0
          %781 = vmatprep.subr.mxu0 0.0
          %782 = vmatpush1.msra.mxu0 0.0
          %783 = vmatprep.subr.mxu0 0.0
          %784 = vmatpush1.msra.mxu0 0.0
          %785 = vmatprep.subr.mxu0 0.0
          %786 = vmatpush1.msra.mxu0 0.0
          %787 = vmatprep.subr.mxu0 0.0
          %788 = vmatpush1.msra.mxu0 0.0
          %789 = vmatprep.subr.mxu0 0.0
          %790 = vmatpush1.msra.mxu0 0.0
          %791 = vmatprep.subr.mxu0 0.0
          %792 = vmatpush1.msra.mxu0 0.0
          %793 = vmatprep.subr.mxu0 0.0
          %794 = vmatpush1.msra.mxu0 0.0
          %795 = vmatprep.subr.mxu0 0.0
          %796 = vmatpush1.msra.mxu0 0.0
          %797 = vmatprep.subr.mxu0 0.0
          %798 = vmatpush1.msra.mxu0 0.0
          %799 = vmatprep.subr.mxu0 0.0
          %800 = vmatpush1.msra.mxu0 0.0
          %801 = vmatprep.subr.mxu0 0.0
          %802 = vmatpush1.msra.mxu0 0.0
          %803 = vmatprep.subr.mxu0 0.0
          %804 = vmatpush1.msra.mxu0 0.0
          %805 = vmatprep.subr.mxu0 0.0
          %806 = vmatpush1.msra.mxu0 0.0
          %807 = vmatprep.subr.mxu0 0.0
          %808 = vmatpush1.msra.mxu0 0.0
          %809 = vmatprep.subr.mxu0 0.0
          %810 = vmatpush1.msra.mxu0 0.0
          %811 = vmatprep.subr.mxu0 0.0
          %812 = vmatpush1.msra.mxu0 0.0
          %813 = vmatprep.subr.mxu0 0.0
          %814 = vmatpush1.msra.mxu0 0.0
          %815 = vmatprep.subr.mxu0 0.0
          %816 = vmatpush1.msra.mxu0 0.0
          %817 = vmatprep.subr.mxu0 0.0
          %818 = vmatpush1.msra.mxu0 0.0
          %819 = vmatprep.subr.mxu0 0.0
          %820 = vmatpush1.msra.mxu0 0.0
          %821 = vmatprep.subr.mxu0 0.0
          %822 = vmatpush1.msra.mxu0 0.0
          %823 = vmatprep.subr.mxu0 0.0
          %824 = vmatpush1.msra.mxu0 0.0
          %825 = vmatprep.subr.mxu0 0.0
          %826 = vmatpush1.msra.mxu0 0.0
          %827 = vmatprep.subr.mxu0 0.0
          %828 = vmatpush1.msra.mxu0 0.0
          %829 = vmatprep.subr.mxu0 0.0
          %830 = vmatpush1.msra.mxu0 0.0
          %831 = vmatprep.mubr.f32.mxu0 0.0
          %832 = vmatmul.mubr.f32.gmra.mrb[0].mxu0 %v679
          %v833 = vpop.f32.mrb[0].mxu0
          %v834 = vadd.f32 %v765, %v833
          %v835 = vpop.f32.mrb[0].mxu0
          %836 = vdwg.mxu0
          %v837 = vmul.f32 %v834, 0.25
          %s838 = scalar_lea.vmem [#allocation2], 8
          %839 = vst.msk [vmem:[%s838] sm:$0xff] %vm752, %v837
          %vm840 = vcmask 7168
          %841 = vst.msk [vmem:[#allocation3] sm:$0xff] %vm840, -inf
          %842 = vst.msk [vmem:[#allocation3 + $0x8] sm:$0xff] %vm840, -inf
          %843 = vst.msk [vmem:[#allocation4] sm:$0xff] %vm840, 0.0
          %844 = vst.msk [vmem:[#allocation4 + $0x8] sm:$0xff] %vm840, 0.0
          %845 = vst.msk [vmem:[#allocation5] sm:$0xff] %vm752, 0.0
          %846 = vst.msk [vmem:[#allocation5 + $0x8] sm:$0xff] %vm752, 0.0
        $region96: #{tpu_custom_call.1} parent=91 // pred_fallthru
          _
        %v847 = vld [vmem:[%s630] sm:$0xff]
        %v848 = vld [vmem:[%s2] sm:$0x1]
        %v849 = vld [vmem:[%s3] sm:$0x1]
        %vm850 = vcmask 261120
        %v851 = vsel %vm850, %v847, 0.0
        %852 = vadd.xlane.f32.xlu0 %v851
        %v853 = vpop.xlane.xlu0 %852
        %v854 = vrcp.pop 32.0
        %v855 = vmul.f32 %v853, %v854
        %v856 = vsub.f32 %v847, %v855
        %v857 = vmul.f32 %v856, %v856
        %v858 = vsel %vm850, %v857, 0.0
        %859 = vadd.xlane.f32.xlu0 %v858
        %v860 = vpop.xlane.xlu0 %859
        %v861 = vmul.f32 %v860, %v854
        %v862 = vadd.f32 %v861, 1e-05
        %v863 = vrsqrt.pop %v862
        %v864 = vmul.f32 %v856, %v863
        %v866 = vlaneseq
        %v867 = vshrl.u32 %v866, 7
        %v868 = vsub.s32 0, %v867
        %v869 = vrot.slane %v848, %v868
        %v871 = vmul.f32 %v864, %v869
        %v873 = vlaneseq
        %v874 = vshrl.u32 %v873, 7
        %v875 = vsub.s32 0, %v874
        %v876 = vrot.slane %v849, %v875
        %v878 = vadd.f32 %v871, %v876
        %v879 = vld [vmem:[%s6] sm:$0xff]
        %v880 = vld [vmem:[%s6 + $0x8] sm:$0xff]
        %v881 = vld [vmem:[%s6 + $0x10] sm:$0xff]
        %v882 = vld [vmem:[%s6 + $0x18] sm:$0xff]
        %v883 = vld [vmem:[%s7] sm:$0x1]
        %v885 = vlaneseq
        %v886 = vshrl.u32 %v885, 7
        %v887 = vsub.s32 0, %v886
        %v888 = vrot.slane %v883, %v887
        %v891 = vsel %vm850, %v878, 0
        %893 = vmatprep.subr.mxu0 0.0
        %894 = vmatpush1.msra.mxu0 %v879
        %895 = vmatprep.subr.mxu0 0.0
        %896 = vmatpush1.msra.mxu0 %v880
        %897 = vmatprep.subr.mxu0 0.0
        %898 = vmatpush1.msra.mxu0 %v881
        %899 = vmatprep.subr.mxu0 0.0
        %900 = vmatpush1.msra.mxu0 %v882
        %901 = vmatprep.subr.mxu0 0.0
        %902 = vmatpush1.msra.mxu0 0.0
        %903 = vmatprep.subr.mxu0 0.0
        %904 = vmatpush1.msra.mxu0 0.0
        %905 = vmatprep.subr.mxu0 0.0
        %906 = vmatpush1.msra.mxu0 0.0
        %907 = vmatprep.subr.mxu0 0.0
        %908 = vmatpush1.msra.mxu0 0.0
        %909 = vmatprep.subr.mxu0 0.0
        %910 = vmatpush1.msra.mxu0 0.0
        %911 = vmatprep.subr.mxu0 0.0
        %912 = vmatpush1.msra.mxu0 0.0
        %913 = vmatprep.subr.mxu0 0.0
        %914 = vmatpush1.msra.mxu0 0.0
        %915 = vmatprep.subr.mxu0 0.0
        %916 = vmatpush1.msra.mxu0 0.0
        %917 = vmatprep.subr.mxu0 0.0
        %918 = vmatpush1.msra.mxu0 0.0
        %919 = vmatprep.subr.mxu0 0.0
        %920 = vmatpush1.msra.mxu0 0.0
        %921 = vmatprep.subr.mxu0 0.0
        %922 = vmatpush1.msra.mxu0 0.0
        %923 = vmatprep.subr.mxu0 0.0
        %924 = vmatpush1.msra.mxu0 0.0
        %925 = vmatprep.subr.mxu0 0.0
        %926 = vmatpush1.msra.mxu0 0.0
        %927 = vmatprep.subr.mxu0 0.0
        %928 = vmatpush1.msra.mxu0 0.0
        %929 = vmatprep.subr.mxu0 0.0
        %930 = vmatpush1.msra.mxu0 0.0
        %931 = vmatprep.subr.mxu0 0.0
        %932 = vmatpush1.msra.mxu0 0.0
        %933 = vmatprep.subr.mxu0 0.0
        %934 = vmatpush1.msra.mxu0 0.0
        %935 = vmatprep.subr.mxu0 0.0
        %936 = vmatpush1.msra.mxu0 0.0
        %937 = vmatprep.subr.mxu0 0.0
        %938 = vmatpush1.msra.mxu0 0.0
        %939 = vmatprep.subr.mxu0 0.0
        %940 = vmatpush1.msra.mxu0 0.0
        %941 = vmatprep.subr.mxu0 0.0
        %942 = vmatpush1.msra.mxu0 0.0
        %943 = vmatprep.subr.mxu0 0.0
        %944 = vmatpush1.msra.mxu0 0.0
        %945 = vmatprep.subr.mxu0 0.0
        %946 = vmatpush1.msra.mxu0 0.0
        %947 = vmatprep.subr.mxu0 0.0
        %948 = vmatpush1.msra.mxu0 0.0
        %949 = vmatprep.subr.mxu0 0.0
        %950 = vmatpush1.msra.mxu0 0.0
        %951 = vmatprep.subr.mxu0 0.0
        %952 = vmatpush1.msra.mxu0 0.0
        %953 = vmatprep.subr.mxu0 0.0
        %954 = vmatpush1.msra.mxu0 0.0
        %955 = vmatprep.subr.mxu0 0.0
        %956 = vmatpush1.msra.mxu0 0.0
        %957 = vmatprep.mubr.f32.mxu0 0.0
        %958 = vmatmul.mubr.f32.gmra.mrb[0].mxu0 %v891
        %v959 = vpop.f32.mrb[0].mxu0
        %v960 = vadd.f32 %v888, %v959
        %v961 = vpop.f32.mrb[0].mxu0
        %962 = vdwg.mxu0
        %v963 = vld [vmem:[%s8] sm:$0xff]
        %v964 = vld [vmem:[%s8 + $0x8] sm:$0xff]
        %v965 = vld [vmem:[%s8 + $0x10] sm:$0xff]
        %v966 = vld [vmem:[%s8 + $0x18] sm:$0xff]
        %v967 = vld [vmem:[%s9] sm:$0x1]
        %v969 = vlaneseq
        %v970 = vshrl.u32 %v969, 7
        %v971 = vsub.s32 0, %v970
        %v972 = vrot.slane %v967, %v971
        %974 = vmatprep.subr.mxu0 0.0
        %975 = vmatpush1.msra.mxu0 %v963
        %976 = vmatprep.subr.mxu0 0.0
        %977 = vmatpush1.msra.mxu0 %v964
        %978 = vmatprep.subr.mxu0 0.0
        %979 = vmatpush1.msra.mxu0 %v965
        %980 = vmatprep.subr.mxu0 0.0
        %981 = vmatpush1.msra.mxu0 %v966
        %982 = vmatprep.subr.mxu0 0.0
        %983 = vmatpush1.msra.mxu0 0.0
        %984 = vmatprep.subr.mxu0 0.0
        %985 = vmatpush1.msra.mxu0 0.0
        %986 = vmatprep.subr.mxu0 0.0
        %987 = vmatpush1.msra.mxu0 0.0
        %988 = vmatprep.subr.mxu0 0.0
        %989 = vmatpush1.msra.mxu0 0.0
        %990 = vmatprep.subr.mxu0 0.0
        %991 = vmatpush1.msra.mxu0 0.0
        %992 = vmatprep.subr.mxu0 0.0
        %993 = vmatpush1.msra.mxu0 0.0
        %994 = vmatprep.subr.mxu0 0.0
        %995 = vmatpush1.msra.mxu0 0.0
        %996 = vmatprep.subr.mxu0 0.0
        %997 = vmatpush1.msra.mxu0 0.0
        %998 = vmatprep.subr.mxu0 0.0
        %999 = vmatpush1.msra.mxu0 0.0
        %1000 = vmatprep.subr.mxu0 0.0
        %1001 = vmatpush1.msra.mxu0 0.0
        %1002 = vmatprep.subr.mxu0 0.0
        %1003 = vmatpush1.msra.mxu0 0.0
        %1004 = vmatprep.subr.mxu0 0.0
        %1005 = vmatpush1.msra.mxu0 0.0
        %1006 = vmatprep.subr.mxu0 0.0
        %1007 = vmatpush1.msra.mxu0 0.0
        %1008 = vmatprep.subr.mxu0 0.0
        %1009 = vmatpush1.msra.mxu0 0.0
        %1010 = vmatprep.subr.mxu0 0.0
        %1011 = vmatpush1.msra.mxu0 0.0
        %1012 = vmatprep.subr.mxu0 0.0
        %1013 = vmatpush1.msra.mxu0 0.0
        %1014 = vmatprep.subr.mxu0 0.0
        %1015 = vmatpush1.msra.mxu0 0.0
        %1016 = vmatprep.subr.mxu0 0.0
        %1017 = vmatpush1.msra.mxu0 0.0
        %1018 = vmatprep.subr.mxu0 0.0
        %1019 = vmatpush1.msra.mxu0 0.0
        %1020 = vmatprep.subr.mxu0 0.0
        %1021 = vmatpush1.msra.mxu0 0.0
        %1022 = vmatprep.subr.mxu0 0.0
        %1023 = vmatpush1.msra.mxu0 0.0
        %1024 = vmatprep.subr.mxu0 0.0
        %1025 = vmatpush1.msra.mxu0 0.0
        %1026 = vmatprep.subr.mxu0 0.0
        %1027 = vmatpush1.msra.mxu0 0.0
        %1028 = vmatprep.subr.mxu0 0.0
        %1029 = vmatpush1.msra.mxu0 0.0
        %1030 = vmatprep.subr.mxu0 0.0
        %1031 = vmatpush1.msra.mxu0 0.0
        %1032 = vmatprep.subr.mxu0 0.0
        %1033 = vmatpush1.msra.mxu0 0.0
        %1034 = vmatprep.subr.mxu0 0.0
        %1035 = vmatpush1.msra.mxu0 0.0
        %1036 = vmatprep.subr.mxu0 0.0
        %1037 = vmatpush1.msra.mxu0 0.0
        %1038 = vmatprep.mubr.f32.mxu0 0.0
        %1039 = vmatmul.mubr.f32.gmra.mrb[0].mxu0 %v891
        %v1040 = vpop.f32.mrb[0].mxu0
        %v1041 = vadd.f32 %v972, %v1040
        %v1042 = vpop.f32.mrb[0].mxu0
        %1043 = vdwg.mxu0
        %v1044 = vld [vmem:[#allocation2] sm:$0xff]
        %vm1045 = vcmask 130048
        %v1047 = vsel %vm1045, %v1044, 0
        %v1050 = vsel %vm1045, %v960, 0
        %1052 = vmatprep.subr.mxu0 0.0
        %1053 = vmatpush1.xpose.msra.mxu0 %v1050
        %1054 = vmatprep.subr.mxu0 0.0
        %1055 = vmatpush1.xpose.msra.mxu0 0.0
        %1056 = vmatprep.subr.mxu0 0.0
        %1057 = vmatpush1.xpose.msra.mxu0 0.0
        %1058 = vmatprep.subr.mxu0 0.0
        %1059 = vmatpush1.xpose.msra.mxu0 0.0
        %1060 = vmatprep.subr.mxu0 0.0
        %1061 = vmatpush1.xpose.msra.mxu0 0.0
        %1062 = vmatprep.subr.mxu0 0.0
        %1063 = vmatpush1.xpose.msra.mxu0 0.0
        %1064 = vmatprep.subr.mxu0 0.0
        %1065 = vmatpush1.xpose.msra.mxu0 0.0
        %1066 = vmatprep.subr.mxu0 0.0
        %1067 = vmatpush1.xpose.msra.mxu0 0.0
        %1068 = vmatprep.subr.mxu0 0.0
        %1069 = vmatpush1.xpose.msra.mxu0 0.0
        %1070 = vmatprep.subr.mxu0 0.0
        %1071 = vmatpush1.xpose.msra.mxu0 0.0
        %1072 = vmatprep.subr.mxu0 0.0
        %1073 = vmatpush1.xpose.msra.mxu0 0.0
        %1074 = vmatprep.subr.mxu0 0.0
        %1075 = vmatpush1.xpose.msra.mxu0 0.0
        %1076 = vmatprep.subr.mxu0 0.0
        %1077 = vmatpush1.xpose.msra.mxu0 0.0
        %1078 = vmatprep.subr.mxu0 0.0
        %1079 = vmatpush1.xpose.msra.mxu0 0.0
        %1080 = vmatprep.subr.mxu0 0.0
        %1081 = vmatpush1.xpose.msra.mxu0 0.0
        %1082 = vmatprep.subr.mxu0 0.0
        %1083 = vmatpush1.xpose.msra.mxu0 0.0
        %1084 = vmatprep.subr.mxu0 0.0
        %1085 = vmatpush1.xpose.msra.mxu0 0.0
        %1086 = vmatprep.subr.mxu0 0.0
        %1087 = vmatpush1.xpose.msra.mxu0 0.0
        %1088 = vmatprep.subr.mxu0 0.0
        %1089 = vmatpush1.xpose.msra.mxu0 0.0
        %1090 = vmatprep.subr.mxu0 0.0
        %1091 = vmatpush1.xpose.msra.mxu0 0.0
        %1092 = vmatprep.subr.mxu0 0.0
        %1093 = vmatpush1.xpose.msra.mxu0 0.0
        %1094 = vmatprep.subr.mxu0 0.0
        %1095 = vmatpush1.xpose.msra.mxu0 0.0
        %1096 = vmatprep.subr.mxu0 0.0
        %1097 = vmatpush1.xpose.msra.mxu0 0.0
        %1098 = vmatprep.subr.mxu0 0.0
        %1099 = vmatpush1.xpose.msra.mxu0 0.0
        %1100 = vmatprep.subr.mxu0 0.0
        %1101 = vmatpush1.xpose.msra.mxu0 0.0
        %1102 = vmatprep.subr.mxu0 0.0
        %1103 = vmatpush1.xpose.msra.mxu0 0.0
        %1104 = vmatprep.subr.mxu0 0.0
        %1105 = vmatpush1.xpose.msra.mxu0 0.0
        %1106 = vmatprep.subr.mxu0 0.0
        %1107 = vmatpush1.xpose.msra.mxu0 0.0
        %1108 = vmatprep.subr.mxu0 0.0
        %1109 = vmatpush1.xpose.msra.mxu0 0.0
        %1110 = vmatprep.subr.mxu0 0.0
        %1111 = vmatpush1.xpose.msra.mxu0 0.0
        %1112 = vmatprep.subr.mxu0 0.0
        %1113 = vmatpush1.xpose.msra.mxu0 0.0
        %1114 = vmatprep.subr.mxu0 0.0
        %1115 = vmatpush1.xpose.msra.mxu0 0.0
        %1116 = vmatprep.mubr.f32.mxu0 0.0
        %1117 = vmatmul.mubr.f32.gmra.mrb[0].mxu0 %v1047
        %v1118 = vpop.f32.mrb[0].mxu0
        %v1119 = vadd.f32 0.0, %v1118
        %v1120 = vpop.f32.mrb[0].mxu0
        %1121 = vdwg.mxu0
        %v1122 = vld [vmem:[#allocation3] sm:$0xff]
        %vm1123 = vcmask 64512
        %v1124 = vsel %vm1123, %v1119, -inf
        %1125 = vmax.xlane.f32.xlu0 %v1124
        %v1126 = vpop.xlane.xlu0 %1125
        %v1127 = vmax.f32 %v1122, %v1126
        %v1128 = vsub.f32 %v1122, %v1127
        %v1129 = vmul.f32 %v1128, 1.442695
        %v1130 = vpow.pop %v1129
        %1132 = vset.pattern.permute.xlu0 0
        %1133 = vperm.xlu0 %1132, %v1127
        %v1134 = vpop.permute.xlu0 %1133
        %v1136 = vsub.f32 %v1119, %v1134
        %v1137 = vmul.f32 %v1136, 1.442695
        %v1138 = vpow.pop %v1137
        %v1139 = vld [vmem:[#allocation4] sm:$0xff]
        %v1140 = vmul.f32 %v1130, %v1139
        %v1141 = vsel %vm1123, %v1138, 0.0
        %1142 = vadd.xlane.f32.xlu0 %v1141
        %v1143 = vpop.xlane.xlu0 %1142
        %v1144 = vadd.f32 %v1140, %v1143
        %vm1145 = vcmask 7168
        %1146 = vst.msk [vmem:[#allocation4] sm:$0xff] %vm1145, %v1144
        %v1147 = vld [vmem:[#allocation5] sm:$0xff]
        %1149 = vset.pattern.permute.xlu0 0
        %1150 = vperm.xlu0 %1149, %v1130
        %v1151 = vpop.permute.xlu0 %1150
        %v1153 = vmul.f32 %v1151, %v1147
        %v1155 = vsel %vm1123, %v1138, 0
        %1157 = vmatprep.subr.mxu0 0.0
        %1158 = vmatpush1.msra.mxu0 %v1041
        %1159 = vmatprep.subr.mxu0 0.0
        %1160 = vmatpush1.msra.mxu0 0.0
        %1161 = vmatprep.subr.mxu0 0.0
        %1162 = vmatpush1.msra.mxu0 0.0
        %1163 = vmatprep.subr.mxu0 0.0
        %1164 = vmatpush1.msra.mxu0 0.0
        %1165 = vmatprep.subr.mxu0 0.0
        %1166 = vmatpush1.msra.mxu0 0.0
        %1167 = vmatprep.subr.mxu0 0.0
        %1168 = vmatpush1.msra.mxu0 0.0
        %1169 = vmatprep.subr.mxu0 0.0
        %1170 = vmatpush1.msra.mxu0 0.0
        %1171 = vmatprep.subr.mxu0 0.0
        %1172 = vmatpush1.msra.mxu0 0.0
        %1173 = vmatprep.subr.mxu0 0.0
        %1174 = vmatpush1.msra.mxu0 0.0
        %1175 = vmatprep.subr.mxu0 0.0
        %1176 = vmatpush1.msra.mxu0 0.0
        %1177 = vmatprep.subr.mxu0 0.0
        %1178 = vmatpush1.msra.mxu0 0.0
        %1179 = vmatprep.subr.mxu0 0.0
        %1180 = vmatpush1.msra.mxu0 0.0
        %1181 = vmatprep.subr.mxu0 0.0
        %1182 = vmatpush1.msra.mxu0 0.0
        %1183 = vmatprep.subr.mxu0 0.0
        %1184 = vmatpush1.msra.mxu0 0.0
        %1185 = vmatprep.subr.mxu0 0.0
        %1186 = vmatpush1.msra.mxu0 0.0
        %1187 = vmatprep.subr.mxu0 0.0
        %1188 = vmatpush1.msra.mxu0 0.0
        %1189 = vmatprep.subr.mxu0 0.0
        %1190 = vmatpush1.msra.mxu0 0.0
        %1191 = vmatprep.subr.mxu0 0.0
        %1192 = vmatpush1.msra.mxu0 0.0
        %1193 = vmatprep.subr.mxu0 0.0
        %1194 = vmatpush1.msra.mxu0 0.0
        %1195 = vmatprep.subr.mxu0 0.0
        %1196 = vmatpush1.msra.mxu0 0.0
        %1197 = vmatprep.subr.mxu0 0.0
        %1198 = vmatpush1.msra.mxu0 0.0
        %1199 = vmatprep.subr.mxu0 0.0
        %1200 = vmatpush1.msra.mxu0 0.0
        %1201 = vmatprep.subr.mxu0 0.0
        %1202 = vmatpush1.msra.mxu0 0.0
        %1203 = vmatprep.subr.mxu0 0.0
        %1204 = vmatpush1.msra.mxu0 0.0
        %1205 = vmatprep.subr.mxu0 0.0
        %1206 = vmatpush1.msra.mxu0 0.0
        %1207 = vmatprep.subr.mxu0 0.0
        %1208 = vmatpush1.msra.mxu0 0.0
        %1209 = vmatprep.subr.mxu0 0.0
        %1210 = vmatpush1.msra.mxu0 0.0
        %1211 = vmatprep.subr.mxu0 0.0
        %1212 = vmatpush1.msra.mxu0 0.0
        %1213 = vmatprep.subr.mxu0 0.0
        %1214 = vmatpush1.msra.mxu0 0.0
        %1215 = vmatprep.subr.mxu0 0.0
        %1216 = vmatpush1.msra.mxu0 0.0
        %1217 = vmatprep.subr.mxu0 0.0
        %1218 = vmatpush1.msra.mxu0 0.0
        %1219 = vmatprep.subr.mxu0 0.0
        %1220 = vmatpush1.msra.mxu0 0.0
        %1221 = vmatprep.mubr.f32.mxu0 0.0
        %1222 = vmatmul.mubr.f32.gmra.mrb[0].mxu0 %v1155
        %v1223 = vpop.f32.mrb[0].mxu0
        %v1224 = vadd.f32 0.0, %v1223
        %v1225 = vpop.f32.mrb[0].mxu0
        %1226 = vdwg.mxu0
        %v1227 = vadd.f32 %v1153, %v1224
        %1228 = vst.msk [vmem:[#allocation5] sm:$0xff] %vm1045, %v1227
        %1229 = vst.msk [vmem:[#allocation3] sm:$0xff] %vm1145, %v1127
        %s1230 = scalar_lea.vmem %s6, 32
        %v1231 = vld [vmem:[%s1230] sm:$0xff]
        %v1232 = vld [vmem:[%s1230 + $0x8] sm:$0xff]
        %v1233 = vld [vmem:[%s1230 + $0x10] sm:$0xff]
        %v1234 = vld [vmem:[%s1230 + $0x18] sm:$0xff]
        %s1235 = scalar_lea.vmem %s7, 1
        %v1236 = vld [vmem:[%s1235] sm:$0x1]
        %v1238 = vlaneseq
        %v1239 = vshrl.u32 %v1238, 7
        %v1240 = vsub.s32 0, %v1239
        %v1241 = vrot.slane %v1236, %v1240
        %1243 = vmatprep.subr.mxu0 0.0
        %1244 = vmatpush1.msra.mxu0 %v1231
        %1245 = vmatprep.subr.mxu0 0.0
        %1246 = vmatpush1.msra.mxu0 %v1232
        %1247 = vmatprep.subr.mxu0 0.0
        %1248 = vmatpush1.msra.mxu0 %v1233
        %1249 = vmatprep.subr.mxu0 0.0
        %1250 = vmatpush1.msra.mxu0 %v1234
        %1251 = vmatprep.subr.mxu0 0.0
        %1252 = vmatpush1.msra.mxu0 0.0
        %1253 = vmatprep.subr.mxu0 0.0
        %1254 = vmatpush1.msra.mxu0 0.0
        %1255 = vmatprep.subr.mxu0 0.0
        %1256 = vmatpush1.msra.mxu0 0.0
        %1257 = vmatprep.subr.mxu0 0.0
        %1258 = vmatpush1.msra.mxu0 0.0
        %1259 = vmatprep.subr.mxu0 0.0
        %1260 = vmatpush1.msra.mxu0 0.0
        %1261 = vmatprep.subr.mxu0 0.0
        %1262 = vmatpush1.msra.mxu0 0.0
        %1263 = vmatprep.subr.mxu0 0.0
        %1264 = vmatpush1.msra.mxu0 0.0
        %1265 = vmatprep.subr.mxu0 0.0
        %1266 = vmatpush1.msra.mxu0 0.0
        %1267 = vmatprep.subr.mxu0 0.0
        %1268 = vmatpush1.msra.mxu0 0.0
        %1269 = vmatprep.subr.mxu0 0.0
        %1270 = vmatpush1.msra.mxu0 0.0
        %1271 = vmatprep.subr.mxu0 0.0
        %1272 = vmatpush1.msra.mxu0 0.0
        %1273 = vmatprep.subr.mxu0 0.0
        %1274 = vmatpush1.msra.mxu0 0.0
        %1275 = vmatprep.subr.mxu0 0.0
        %1276 = vmatpush1.msra.mxu0 0.0
        %1277 = vmatprep.subr.mxu0 0.0
        %1278 = vmatpush1.msra.mxu0 0.0
        %1279 = vmatprep.subr.mxu0 0.0
        %1280 = vmatpush1.msra.mxu0 0.0
        %1281 = vmatprep.subr.mxu0 0.0
        %1282 = vmatpush1.msra.mxu0 0.0
        %1283 = vmatprep.subr.mxu0 0.0
        %1284 = vmatpush1.msra.mxu0 0.0
        %1285 = vmatprep.subr.mxu0 0.0
        %1286 = vmatpush1.msra.mxu0 0.0
        %1287 = vmatprep.subr.mxu0 0.0
        %1288 = vmatpush1.msra.mxu0 0.0
        %1289 = vmatprep.subr.mxu0 0.0
        %1290 = vmatpush1.msra.mxu0 0.0
        %1291 = vmatprep.subr.mxu0 0.0
        %1292 = vmatpush1.msra.mxu0 0.0
        %1293 = vmatprep.subr.mxu0 0.0
        %1294 = vmatpush1.msra.mxu0 0.0
        %1295 = vmatprep.subr.mxu0 0.0
        %1296 = vmatpush1.msra.mxu0 0.0
        %1297 = vmatprep.subr.mxu0 0.0
        %1298 = vmatpush1.msra.mxu0 0.0
        %1299 = vmatprep.subr.mxu0 0.0
        %1300 = vmatpush1.msra.mxu0 0.0
        %1301 = vmatprep.subr.mxu0 0.0
        %1302 = vmatpush1.msra.mxu0 0.0
        %1303 = vmatprep.subr.mxu0 0.0
        %1304 = vmatpush1.msra.mxu0 0.0
        %1305 = vmatprep.subr.mxu0 0.0
        %1306 = vmatpush1.msra.mxu0 0.0
        %1307 = vmatprep.mubr.f32.mxu0 0.0
        %1308 = vmatmul.mubr.f32.gmra.mrb[0].mxu0 %v891
        %v1309 = vpop.f32.mrb[0].mxu0
        %v1310 = vadd.f32 %v1241, %v1309
        %v1311 = vpop.f32.mrb[0].mxu0
        %1312 = vdwg.mxu0
        %s1313 = scalar_lea.vmem %s8, 32
        %v1314 = vld [vmem:[%s1313] sm:$0xff]
        %v1315 = vld [vmem:[%s1313 + $0x8] sm:$0xff]
        %v1316 = vld [vmem:[%s1313 + $0x10] sm:$0xff]
        %v1317 = vld [vmem:[%s1313 + $0x18] sm:$0xff]
        %s1318 = scalar_lea.vmem %s9, 1
        %v1319 = vld [vmem:[%s1318] sm:$0x1]
        %v1321 = vlaneseq
        %v1322 = vshrl.u32 %v1321, 7
        %v1323 = vsub.s32 0, %v1322
        %v1324 = vrot.slane %v1319, %v1323
        %1326 = vmatprep.subr.mxu0 0.0
        %1327 = vmatpush1.msra.mxu0 %v1314
        %1328 = vmatprep.subr.mxu0 0.0
        %1329 = vmatpush1.msra.mxu0 %v1315
        %1330 = vmatprep.subr.mxu0 0.0
        %1331 = vmatpush1.msra.mxu0 %v1316
        %1332 = vmatprep.subr.mxu0 0.0
        %1333 = vmatpush1.msra.mxu0 %v1317
        %1334 = vmatprep.subr.mxu0 0.0
        %1335 = vmatpush1.msra.mxu0 0.0
        %1336 = vmatprep.subr.mxu0 0.0
        %1337 = vmatpush1.msra.mxu0 0.0
        %1338 = vmatprep.subr.mxu0 0.0
        %1339 = vmatpush1.msra.mxu0 0.0
        %1340 = vmatprep.subr.mxu0 0.0
        %1341 = vmatpush1.msra.mxu0 0.0
        %1342 = vmatprep.subr.mxu0 0.0
        %1343 = vmatpush1.msra.mxu0 0.0
        %1344 = vmatprep.subr.mxu0 0.0
        %1345 = vmatpush1.msra.mxu0 0.0
        %1346 = vmatprep.subr.mxu0 0.0
        %1347 = vmatpush1.msra.mxu0 0.0
        %1348 = vmatprep.subr.mxu0 0.0
        %1349 = vmatpush1.msra.mxu0 0.0
        %1350 = vmatprep.subr.mxu0 0.0
        %1351 = vmatpush1.msra.mxu0 0.0
        %1352 = vmatprep.subr.mxu0 0.0
        %1353 = vmatpush1.msra.mxu0 0.0
        %1354 = vmatprep.subr.mxu0 0.0
        %1355 = vmatpush1.msra.mxu0 0.0
        %1356 = vmatprep.subr.mxu0 0.0
        %1357 = vmatpush1.msra.mxu0 0.0
        %1358 = vmatprep.subr.mxu0 0.0
        %1359 = vmatpush1.msra.mxu0 0.0
        %1360 = vmatprep.subr.mxu0 0.0
        %1361 = vmatpush1.msra.mxu0 0.0
        %1362 = vmatprep.subr.mxu0 0.0
        %1363 = vmatpush1.msra.mxu0 0.0
        %1364 = vmatprep.subr.mxu0 0.0
        %1365 = vmatpush1.msra.mxu0 0.0
        %1366 = vmatprep.subr.mxu0 0.0
        %1367 = vmatpush1.msra.mxu0 0.0
        %1368 = vmatprep.subr.mxu0 0.0
        %1369 = vmatpush1.msra.mxu0 0.0
        %1370 = vmatprep.subr.mxu0 0.0
        %1371 = vmatpush1.msra.mxu0 0.0
        %1372 = vmatprep.subr.mxu0 0.0
        %1373 = vmatpush1.msra.mxu0 0.0
        %1374 = vmatprep.subr.mxu0 0.0
        %1375 = vmatpush1.msra.mxu0 0.0
        %1376 = vmatprep.subr.mxu0 0.0
        %1377 = vmatpush1.msra.mxu0 0.0
        %1378 = vmatprep.subr.mxu0 0.0
        %1379 = vmatpush1.msra.mxu0 0.0
        %1380 = vmatprep.subr.mxu0 0.0
        %1381 = vmatpush1.msra.mxu0 0.0
        %1382 = vmatprep.subr.mxu0 0.0
        %1383 = vmatpush1.msra.mxu0 0.0
        %1384 = vmatprep.subr.mxu0 0.0
        %1385 = vmatpush1.msra.mxu0 0.0
        %1386 = vmatprep.subr.mxu0 0.0
        %1387 = vmatpush1.msra.mxu0 0.0
        %1388 = vmatprep.subr.mxu0 0.0
        %1389 = vmatpush1.msra.mxu0 0.0
        %1390 = vmatprep.mubr.f32.mxu0 0.0
        %1391 = vmatmul.mubr.f32.gmra.mrb[0].mxu0 %v891
        %v1392 = vpop.f32.mrb[0].mxu0
        %v1393 = vadd.f32 %v1324, %v1392
        %v1394 = vpop.f32.mrb[0].mxu0
        %1395 = vdwg.mxu0
        %s1396 = scalar_lea.vmem [#allocation2], 8
        %v1397 = vld [vmem:[%s1396] sm:$0xff]
        %v1399 = vsel %vm1045, %v1397, 0
        %v1402 = vsel %vm1045, %v1310, 0
        %1404 = vmatprep.subr.mxu0 0.0
        %1405 = vmatpush1.xpose.msra.mxu0 %v1402
        %1406 = vmatprep.subr.mxu0 0.0
        %1407 = vmatpush1.xpose.msra.mxu0 0.0
        %1408 = vmatprep.subr.mxu0 0.0
        %1409 = vmatpush1.xpose.msra.mxu0 0.0
        %1410 = vmatprep.subr.mxu0 0.0
        %1411 = vmatpush1.xpose.msra.mxu0 0.0
        %1412 = vmatprep.subr.mxu0 0.0
        %1413 = vmatpush1.xpose.msra.mxu0 0.0
        %1414 = vmatprep.subr.mxu0 0.0
        %1415 = vmatpush1.xpose.msra.mxu0 0.0
        %1416 = vmatprep.subr.mxu0 0.0
        %1417 = vmatpush1.xpose.msra.mxu0 0.0
        %1418 = vmatprep.subr.mxu0 0.0
        %1419 = vmatpush1.xpose.msra.mxu0 0.0
        %1420 = vmatprep.subr.mxu0 0.0
        %1421 = vmatpush1.xpose.msra.mxu0 0.0
        %1422 = vmatprep.subr.mxu0 0.0
        %1423 = vmatpush1.xpose.msra.mxu0 0.0
        %1424 = vmatprep.subr.mxu0 0.0
        %1425 = vmatpush1.xpose.msra.mxu0 0.0
        %1426 = vmatprep.subr.mxu0 0.0
        %1427 = vmatpush1.xpose.msra.mxu0 0.0
        %1428 = vmatprep.subr.mxu0 0.0
        %1429 = vmatpush1.xpose.msra.mxu0 0.0
        %1430 = vmatprep.subr.mxu0 0.0
        %1431 = vmatpush1.xpose.msra.mxu0 0.0
        %1432 = vmatprep.subr.mxu0 0.0
        %1433 = vmatpush1.xpose.msra.mxu0 0.0
        %1434 = vmatprep.subr.mxu0 0.0
        %1435 = vmatpush1.xpose.msra.mxu0 0.0
        %1436 = vmatprep.subr.mxu0 0.0
        %1437 = vmatpush1.xpose.msra.mxu0 0.0
        %1438 = vmatprep.subr.mxu0 0.0
        %1439 = vmatpush1.xpose.msra.mxu0 0.0
        %1440 = vmatprep.subr.mxu0 0.0
        %1441 = vmatpush1.xpose.msra.mxu0 0.0
        %1442 = vmatprep.subr.mxu0 0.0
        %1443 = vmatpush1.xpose.msra.mxu0 0.0
        %1444 = vmatprep.subr.mxu0 0.0
        %1445 = vmatpush1.xpose.msra.mxu0 0.0
        %1446 = vmatprep.subr.mxu0 0.0
        %1447 = vmatpush1.xpose.msra.mxu0 0.0
        %1448 = vmatprep.subr.mxu0 0.0
        %1449 = vmatpush1.xpose.msra.mxu0 0.0
        %1450 = vmatprep.subr.mxu0 0.0
        %1451 = vmatpush1.xpose.msra.mxu0 0.0
        %1452 = vmatprep.subr.mxu0 0.0
        %1453 = vmatpush1.xpose.msra.mxu0 0.0
        %1454 = vmatprep.subr.mxu0 0.0
        %1455 = vmatpush1.xpose.msra.mxu0 0.0
        %1456 = vmatprep.subr.mxu0 0.0
        %1457 = vmatpush1.xpose.msra.mxu0 0.0
        %1458 = vmatprep.subr.mxu0 0.0
        %1459 = vmatpush1.xpose.msra.mxu0 0.0
        %1460 = vmatprep.subr.mxu0 0.0
        %1461 = vmatpush1.xpose.msra.mxu0 0.0
        %1462 = vmatprep.subr.mxu0 0.0
        %1463 = vmatpush1.xpose.msra.mxu0 0.0
        %1464 = vmatprep.subr.mxu0 0.0
        %1465 = vmatpush1.xpose.msra.mxu0 0.0
        %1466 = vmatprep.subr.mxu0 0.0
        %1467 = vmatpush1.xpose.msra.mxu0 0.0
        %1468 = vmatprep.mubr.f32.mxu0 0.0
        %1469 = vmatmul.mubr.f32.gmra.mrb[0].mxu0 %v1399
        %v1470 = vpop.f32.mrb[0].mxu0
        %v1471 = vadd.f32 0.0, %v1470
        %v1472 = vpop.f32.mrb[0].mxu0
        %1473 = vdwg.mxu0
        %s1474 = scalar_lea.vmem [#allocation3], 8
        %v1475 = vld [vmem:[%s1474] sm:$0xff]
        %v1476 = vsel %vm1123, %v1471, -inf
        %1477 = vmax.xlane.f32.xlu0 %v1476
        %v1478 = vpop.xlane.xlu0 %1477
        %v1479 = vmax.f32 %v1475, %v1478
        %v1480 = vsub.f32 %v1475, %v1479
        %v1481 = vmul.f32 %v1480, 1.442695
        %v1482 = vpow.pop %v1481
        %1484 = vset.pattern.permute.xlu0 0
        %1485 = vperm.xlu0 %1484, %v1479
        %v1486 = vpop.permute.xlu0 %1485
        %v1488 = vsub.f32 %v1471, %v1486
        %v1489 = vmul.f32 %v1488, 1.442695
        %v1490 = vpow.pop %v1489
        %s1491 = scalar_lea.vmem [#allocation4], 8
        %v1492 = vld [vmem:[%s1491] sm:$0xff]
        %v1493 = vmul.f32 %v1482, %v1492
        %v1494 = vsel %vm1123, %v1490, 0.0
        %1495 = vadd.xlane.f32.xlu0 %v1494
        %v1496 = vpop.xlane.xlu0 %1495
        %v1497 = vadd.f32 %v1493, %v1496
        %1498 = vst.msk [vmem:[%s1491] sm:$0xff] %vm1145, %v1497
        %s1499 = scalar_lea.vmem [#allocation5], 8
        %v1500 = vld [vmem:[%s1499] sm:$0xff]
        %1502 = vset.pattern.permute.xlu0 0
        %1503 = vperm.xlu0 %1502, %v1482
        %v1504 = vpop.permute.xlu0 %1503
        %v1506 = vmul.f32 %v1504, %v1500
        %v1508 = vsel %vm1123, %v1490, 0
        %1510 = vmatprep.subr.mxu0 0.0
        %1511 = vmatpush1.msra.mxu0 %v1393
        %1512 = vmatprep.subr.mxu0 0.0
        %1513 = vmatpush1.msra.mxu0 0.0
        %1514 = vmatprep.subr.mxu0 0.0
        %1515 = vmatpush1.msra.mxu0 0.0
        %1516 = vmatprep.subr.mxu0 0.0
        %1517 = vmatpush1.msra.mxu0 0.0
        %1518 = vmatprep.subr.mxu0 0.0
        %1519 = vmatpush1.msra.mxu0 0.0
        %1520 = vmatprep.subr.mxu0 0.0
        %1521 = vmatpush1.msra.mxu0 0.0
        %1522 = vmatprep.subr.mxu0 0.0
        %1523 = vmatpush1.msra.mxu0 0.0
        %1524 = vmatprep.subr.mxu0 0.0
        %1525 = vmatpush1.msra.mxu0 0.0
        %1526 = vmatprep.subr.mxu0 0.0
        %1527 = vmatpush1.msra.mxu0 0.0
        %1528 = vmatprep.subr.mxu0 0.0
        %1529 = vmatpush1.msra.mxu0 0.0
        %1530 = vmatprep.subr.mxu0 0.0
        %1531 = vmatpush1.msra.mxu0 0.0
        %1532 = vmatprep.subr.mxu0 0.0
        %1533 = vmatpush1.msra.mxu0 0.0
        %1534 = vmatprep.subr.mxu0 0.0
        %1535 = vmatpush1.msra.mxu0 0.0
        %1536 = vmatprep.subr.mxu0 0.0
        %1537 = vmatpush1.msra.mxu0 0.0
        %1538 = vmatprep.subr.mxu0 0.0
        %1539 = vmatpush1.msra.mxu0 0.0
        %1540 = vmatprep.subr.mxu0 0.0
        %1541 = vmatpush1.msra.mxu0 0.0
        %1542 = vmatprep.subr.mxu0 0.0
        %1543 = vmatpush1.msra.mxu0 0.0
        %1544 = vmatprep.subr.mxu0 0.0
        %1545 = vmatpush1.msra.mxu0 0.0
        %1546 = vmatprep.subr.mxu0 0.0
        %1547 = vmatpush1.msra.mxu0 0.0
        %1548 = vmatprep.subr.mxu0 0.0
        %1549 = vmatpush1.msra.mxu0 0.0
        %1550 = vmatprep.subr.mxu0 0.0
        %1551 = vmatpush1.msra.mxu0 0.0
        %1552 = vmatprep.subr.mxu0 0.0
        %1553 = vmatpush1.msra.mxu0 0.0
        %1554 = vmatprep.subr.mxu0 0.0
        %1555 = vmatpush1.msra.mxu0 0.0
        %1556 = vmatprep.subr.mxu0 0.0
        %1557 = vmatpush1.msra.mxu0 0.0
        %1558 = vmatprep.subr.mxu0 0.0
        %1559 = vmatpush1.msra.mxu0 0.0
        %1560 = vmatprep.subr.mxu0 0.0
        %1561 = vmatpush1.msra.mxu0 0.0
        %1562 = vmatprep.subr.mxu0 0.0
        %1563 = vmatpush1.msra.mxu0 0.0
        %1564 = vmatprep.subr.mxu0 0.0
        %1565 = vmatpush1.msra.mxu0 0.0
        %1566 = vmatprep.subr.mxu0 0.0
        %1567 = vmatpush1.msra.mxu0 0.0
        %1568 = vmatprep.subr.mxu0 0.0
        %1569 = vmatpush1.msra.mxu0 0.0
        %1570 = vmatprep.subr.mxu0 0.0
        %1571 = vmatpush1.msra.mxu0 0.0
        %1572 = vmatprep.subr.mxu0 0.0
        %1573 = vmatpush1.msra.mxu0 0.0
        %1574 = vmatprep.mubr.f32.mxu0 0.0
        %1575 = vmatmul.mubr.f32.gmra.mrb[0].mxu0 %v1508
        %v1576 = vpop.f32.mrb[0].mxu0
        %v1577 = vadd.f32 0.0, %v1576
        %v1578 = vpop.f32.mrb[0].mxu0
        %1579 = vdwg.mxu0
        %v1580 = vadd.f32 %v1506, %v1577
        %1581 = vst.msk [vmem:[%s1499] sm:$0xff] %vm1045, %v1580
        %1582 = vst.msk [vmem:[%s1474] sm:$0xff] %vm1145, %v1479
        // Predicated region
        $region97: #{tpu_custom_call.1} parent=91 // pred_check
          %p1583 = pneg %p631
        $region98: #{tpu_custom_call.1} parent=91 // pred_check_branch
          %1585 = sbr.rel (%p1583) target = $region100
        $region99: #{tpu_custom_call.1} parent=91 // pred_region
          %v1586 = vld [vmem:[%s623] sm:$0xff]
          %v1587 = vld [vmem:[#allocation4] sm:$0xff]
          %v1588 = vrcp.pop %v1587
          %v1589 = vld [vmem:[#allocation5] sm:$0xff]
          %1591 = vset.pattern.permute.xlu0 0
          %1592 = vperm.xlu0 %1591, %v1588
          %v1593 = vpop.permute.xlu0 %1592
          %v1595 = vmul.f32 %v1589, %v1593
          %v1596 = vld [vmem:[%s10] sm:$0xff]
          %v1597 = vld [vmem:[%s10 + $0x8] sm:$0xff]
          %v1598 = vld [vmem:[%s1491] sm:$0xff]
          %v1599 = vrcp.pop %v1598
          %v1600 = vld [vmem:[%s1499] sm:$0xff]
          %1602 = vset.pattern.permute.xlu0 0
          %1603 = vperm.xlu0 %1602, %v1599
          %v1604 = vpop.permute.xlu0 %1603
          %v1606 = vmul.f32 %v1600, %v1604
          %s1607 = scalar_lea.vmem %s10, 16
          %v1608 = vld [vmem:[%s1607] sm:$0xff]
          %v1609 = vld [vmem:[%s1607 + $0x8] sm:$0xff]
          %v1611 = vsel %vm1045, %v1606, 0
          %1613 = vmatprep.subr.mxu0 0.0
          %1614 = vmatpush1.msra.mxu0 %v1608
          %1615 = vmatprep.subr.mxu0 0.0
          %1616 = vmatpush1.msra.mxu0 %v1609
          %1617 = vmatprep.subr.mxu0 0.0
          %1618 = vmatpush1.msra.mxu0 0.0
          %1619 = vmatprep.subr.mxu0 0.0
          %1620 = vmatpush1.msra.mxu0 0.0
          %1621 = vmatprep.subr.mxu0 0.0
          %1622 = vmatpush1.msra.mxu0 0.0
          %1623 = vmatprep.subr.mxu0 0.0
          %1624 = vmatpush1.msra.mxu0 0.0
          %1625 = vmatprep.subr.mxu0 0.0
          %1626 = vmatpush1.msra.mxu0 0.0
          %1627 = vmatprep.subr.mxu0 0.0
          %1628 = vmatpush1.msra.mxu0 0.0
          %1629 = vmatprep.subr.mxu0 0.0
          %1630 = vmatpush1.msra.mxu0 0.0
          %1631 = vmatprep.subr.mxu0 0.0
          %1632 = vmatpush1.msra.mxu0 0.0
          %1633 = vmatprep.subr.mxu0 0.0
          %1634 = vmatpush1.msra.mxu0 0.0
          %1635 = vmatprep.subr.mxu0 0.0
          %1636 = vmatpush1.msra.mxu0 0.0
          %1637 = vmatprep.subr.mxu0 0.0
          %1638 = vmatpush1.msra.mxu0 0.0
          %1639 = vmatprep.subr.mxu0 0.0
          %1640 = vmatpush1.msra.mxu0 0.0
          %1641 = vmatprep.subr.mxu0 0.0
          %1642 = vmatpush1.msra.mxu0 0.0
          %1643 = vmatprep.subr.mxu0 0.0
          %1644 = vmatpush1.msra.mxu0 0.0
          %1645 = vmatprep.subr.mxu0 0.0
          %1646 = vmatpush1.msra.mxu0 0.0
          %1647 = vmatprep.subr.mxu0 0.0
          %1648 = vmatpush1.msra.mxu0 0.0
          %1649 = vmatprep.subr.mxu0 0.0
          %1650 = vmatpush1.msra.mxu0 0.0
          %1651 = vmatprep.subr.mxu0 0.0
          %1652 = vmatpush1.msra.mxu0 0.0
          %1653 = vmatprep.subr.mxu0 0.0
          %1654 = vmatpush1.msra.mxu0 0.0
          %1655 = vmatprep.subr.mxu0 0.0
          %1656 = vmatpush1.msra.mxu0 0.0
          %1657 = vmatprep.subr.mxu0 0.0
          %1658 = vmatpush1.msra.mxu0 0.0
          %1659 = vmatprep.subr.mxu0 0.0
          %1660 = vmatpush1.msra.mxu0 0.0
          %1661 = vmatprep.subr.mxu0 0.0
          %1662 = vmatpush1.msra.mxu0 0.0
          %1663 = vmatprep.subr.mxu0 0.0
          %1664 = vmatpush1.msra.mxu0 0.0
          %1665 = vmatprep.subr.mxu0 0.0
          %1666 = vmatpush1.msra.mxu0 0.0
          %1667 = vmatprep.subr.mxu0 0.0
          %1668 = vmatpush1.msra.mxu0 0.0
          %1669 = vmatprep.subr.mxu0 0.0
          %1670 = vmatpush1.msra.mxu0 0.0
          %1671 = vmatprep.subr.mxu0 0.0
          %1672 = vmatpush1.msra.mxu0 0.0
          %1673 = vmatprep.subr.mxu0 0.0
          %1674 = vmatpush1.msra.mxu0 0.0
          %1675 = vmatprep.subr.mxu0 0.0
          %1676 = vmatpush1.msra.mxu0 0.0
          %1677 = vmatprep.mubr.f32.mxu0 0.0
          %1678 = vmatmul.mubr.f32.gmra.mrb[0].mxu0 %v1611
          %v1679 = vpop.f32.mrb[0].mxu0
          %v1680 = vadd.f32 0.0, %v1679
          %v1681 = vpop.f32.mrb[0].mxu0
          %1682 = vdwg.mxu0
          %v1684 = vsel %vm1045, %v1595, 0
          %1686 = vmatprep.subr.mxu0 0.0
          %1687 = vmatpush1.msra.mxu0 %v1596
          %1688 = vmatprep.subr.mxu0 0.0
          %1689 = vmatpush1.msra.mxu0 %v1597
          %1690 = vmatprep.subr.mxu0 0.0
          %1691 = vmatpush1.msra.mxu0 0.0
          %1692 = vmatprep.subr.mxu0 0.0
          %1693 = vmatpush1.msra.mxu0 0.0
          %1694 = vmatprep.subr.mxu0 0.0
          %1695 = vmatpush1.msra.mxu0 0.0
          %1696 = vmatprep.subr.mxu0 0.0
          %1697 = vmatpush1.msra.mxu0 0.0
          %1698 = vmatprep.subr.mxu0 0.0
          %1699 = vmatpush1.msra.mxu0 0.0
          %1700 = vmatprep.subr.mxu0 0.0
          %1701 = vmatpush1.msra.mxu0 0.0
          %1702 = vmatprep.subr.mxu0 0.0
          %1703 = vmatpush1.msra.mxu0 0.0
          %1704 = vmatprep.subr.mxu0 0.0
          %1705 = vmatpush1.msra.mxu0 0.0
          %1706 = vmatprep.subr.mxu0 0.0
          %1707 = vmatpush1.msra.mxu0 0.0
          %1708 = vmatprep.subr.mxu0 0.0
          %1709 = vmatpush1.msra.mxu0 0.0
          %1710 = vmatprep.subr.mxu0 0.0
          %1711 = vmatpush1.msra.mxu0 0.0
          %1712 = vmatprep.subr.mxu0 0.0
          %1713 = vmatpush1.msra.mxu0 0.0
          %1714 = vmatprep.subr.mxu0 0.0
          %1715 = vmatpush1.msra.mxu0 0.0
          %1716 = vmatprep.subr.mxu0 0.0
          %1717 = vmatpush1.msra.mxu0 0.0
          %1718 = vmatprep.subr.mxu0 0.0
          %1719 = vmatpush1.msra.mxu0 0.0
          %1720 = vmatprep.subr.mxu0 0.0
          %1721 = vmatpush1.msra.mxu0 0.0
          %1722 = vmatprep.subr.mxu0 0.0
          %1723 = vmatpush1.msra.mxu0 0.0
          %1724 = vmatprep.subr.mxu0 0.0
          %1725 = vmatpush1.msra.mxu0 0.0
          %1726 = vmatprep.subr.mxu0 0.0
          %1727 = vmatpush1.msra.mxu0 0.0
          %1728 = vmatprep.subr.mxu0 0.0
          %1729 = vmatpush1.msra.mxu0 0.0
          %1730 = vmatprep.subr.mxu0 0.0
          %1731 = vmatpush1.msra.mxu0 0.0
          %1732 = vmatprep.subr.mxu0 0.0
          %1733 = vmatpush1.msra.mxu0 0.0
          %1734 = vmatprep.subr.mxu0 0.0
          %1735 = vmatpush1.msra.mxu0 0.0
          %1736 = vmatprep.subr.mxu0 0.0
          %1737 = vmatpush1.msra.mxu0 0.0
          %1738 = vmatprep.subr.mxu0 0.0
          %1739 = vmatpush1.msra.mxu0 0.0
          %1740 = vmatprep.subr.mxu0 0.0
          %1741 = vmatpush1.msra.mxu0 0.0
          %1742 = vmatprep.subr.mxu0 0.0
          %1743 = vmatpush1.msra.mxu0 0.0
          %1744 = vmatprep.subr.mxu0 0.0
          %1745 = vmatpush1.msra.mxu0 0.0
          %1746 = vmatprep.subr.mxu0 0.0
          %1747 = vmatpush1.msra.mxu0 0.0
          %1748 = vmatprep.subr.mxu0 0.0
          %1749 = vmatpush1.msra.mxu0 0.0
          %1750 = vmatprep.mubr.f32.mxu0 0.0
          %1751 = vmatmul.mubr.f32.gmra.mrb[0].mxu0 %v1684
          %v1752 = vpop.f32.mrb[0].mxu0
          %v1753 = vadd.f32 %v1680, %v1752
          %v1754 = vpop.f32.mrb[0].mxu0
          %1755 = vdwg.mxu0
          %v1756 = vadd.f32 %v1586, %v1753
          %v1757 = vld [vmem:[%s11] sm:$0x1]
          %v1759 = vlaneseq
          %v1760 = vshrl.u32 %v1759, 7
          %v1761 = vsub.s32 0, %v1760
          %v1762 = vrot.slane %v1757, %v1761
          %v1764 = vadd.f32 %v1756, %v1762
          %v1765 = vld [vmem:[%s12] sm:$0x1]
          %v1766 = vld [vmem:[%s13] sm:$0x1]
          %v1767 = vsel %vm850, %v1764, 0.0
          %1768 = vadd.xlane.f32.xlu0 %v1767
          %v1769 = vpop.xlane.xlu0 %1768
          %v1770 = vmul.f32 %v1769, %v854
          %v1771 = vsub.f32 %v1764, %v1770
          %v1772 = vmul.f32 %v1771, %v1771
          %v1773 = vsel %vm850, %v1772, 0.0
          %1774 = vadd.xlane.f32.xlu0 %v1773
          %v1775 = vpop.xlane.xlu0 %1774
          %v1776 = vmul.f32 %v1775, %v854
          %v1777 = vadd.f32 %v1776, 1e-05
          %v1778 = vrsqrt.pop %v1777
          %v1779 = vmul.f32 %v1771, %v1778
          %v1781 = vlaneseq
          %v1782 = vshrl.u32 %v1781, 7
          %v1783 = vsub.s32 0, %v1782
          %v1784 = vrot.slane %v1765, %v1783
          %v1786 = vmul.f32 %v1779, %v1784
          %v1788 = vlaneseq
          %v1789 = vshrl.u32 %v1788, 7
          %v1790 = vsub.s32 0, %v1789
          %v1791 = vrot.slane %v1766, %v1790
          %v1793 = vadd.f32 %v1786, %v1791
          %v1794 = vld [vmem:[%s14] sm:$0xff]
          %v1795 = vld [vmem:[%s14 + $0x8] sm:$0xff]
          %v1796 = vld [vmem:[%s14 + $0x10] sm:$0xff]
          %v1797 = vld [vmem:[%s14 + $0x18] sm:$0xff]
          %v1798 = vld [vmem:[%s15] sm:$0x1]
          %v1800 = vlaneseq
          %v1801 = vshrl.u32 %v1800, 7
          %v1802 = vsub.s32 0, %v1801
          %v1803 = vrot.slane %v1798, %v1802
          %v1806 = vsel %vm850, %v1793, 0
          %1808 = vmatprep.subr.mxu0 0.0
          %1809 = vmatpush1.msra.mxu0 %v1794
          %1810 = vmatprep.subr.mxu0 0.0
          %1811 = vmatpush1.msra.mxu0 %v1795
          %1812 = vmatprep.subr.mxu0 0.0
          %1813 = vmatpush1.msra.mxu0 %v1796
          %1814 = vmatprep.subr.mxu0 0.0
          %1815 = vmatpush1.msra.mxu0 %v1797
          %1816 = vmatprep.subr.mxu0 0.0
          %1817 = vmatpush1.msra.mxu0 0.0
          %1818 = vmatprep.subr.mxu0 0.0
          %1819 = vmatpush1.msra.mxu0 0.0
          %1820 = vmatprep.subr.mxu0 0.0
          %1821 = vmatpush1.msra.mxu0 0.0
          %1822 = vmatprep.subr.mxu0 0.0
          %1823 = vmatpush1.msra.mxu0 0.0
          %1824 = vmatprep.subr.mxu0 0.0
          %1825 = vmatpush1.msra.mxu0 0.0
          %1826 = vmatprep.subr.mxu0 0.0
          %1827 = vmatpush1.msra.mxu0 0.0
          %1828 = vmatprep.subr.mxu0 0.0
          %1829 = vmatpush1.msra.mxu0 0.0
          %1830 = vmatprep.subr.mxu0 0.0
          %1831 = vmatpush1.msra.mxu0 0.0
          %1832 = vmatprep.subr.mxu0 0.0
          %1833 = vmatpush1.msra.mxu0 0.0
          %1834 = vmatprep.subr.mxu0 0.0
          %1835 = vmatpush1.msra.mxu0 0.0
          %1836 = vmatprep.subr.mxu0 0.0
          %1837 = vmatpush1.msra.mxu0 0.0
          %1838 = vmatprep.subr.mxu0 0.0
          %1839 = vmatpush1.msra.mxu0 0.0
          %1840 = vmatprep.subr.mxu0 0.0
          %1841 = vmatpush1.msra.mxu0 0.0
          %1842 = vmatprep.subr.mxu0 0.0
          %1843 = vmatpush1.msra.mxu0 0.0
          %1844 = vmatprep.subr.mxu0 0.0
          %1845 = vmatpush1.msra.mxu0 0.0
          %1846 = vmatprep.subr.mxu0 0.0
          %1847 = vmatpush1.msra.mxu0 0.0
          %1848 = vmatprep.subr.mxu0 0.0
          %1849 = vmatpush1.msra.mxu0 0.0
          %1850 = vmatprep.subr.mxu0 0.0
          %1851 = vmatpush1.msra.mxu0 0.0
          %1852 = vmatprep.subr.mxu0 0.0
          %1853 = vmatpush1.msra.mxu0 0.0
          %1854 = vmatprep.subr.mxu0 0.0
          %1855 = vmatpush1.msra.mxu0 0.0
          %1856 = vmatprep.subr.mxu0 0.0
          %1857 = vmatpush1.msra.mxu0 0.0
          %1858 = vmatprep.subr.mxu0 0.0
          %1859 = vmatpush1.msra.mxu0 0.0
          %1860 = vmatprep.subr.mxu0 0.0
          %1861 = vmatpush1.msra.mxu0 0.0
          %1862 = vmatprep.subr.mxu0 0.0
          %1863 = vmatpush1.msra.mxu0 0.0
          %1864 = vmatprep.subr.mxu0 0.0
          %1865 = vmatpush1.msra.mxu0 0.0
          %1866 = vmatprep.subr.mxu0 0.0
          %1867 = vmatpush1.msra.mxu0 0.0
          %1868 = vmatprep.subr.mxu0 0.0
          %1869 = vmatpush1.msra.mxu0 0.0
          %1870 = vmatprep.subr.mxu0 0.0
          %1871 = vmatpush1.msra.mxu0 0.0
          %1872 = vmatprep.mubr.f32.mxu0 0.0
          %1873 = vmatmul.mubr.f32.gmra.mrb[0].mxu0 %v1806
          %v1874 = vpop.f32.mrb[0].mxu0
          %v1875 = vadd.f32 %v1803, %v1874
          %v1876 = vpop.f32.mrb[0].mxu0
          %1877 = vdwg.mxu0
          %v1878 = vxor.u32 %v1875, 2147483648
          %v1879 = vmul.f32 %v1878, 1.442695
          %v1880 = vpow.pop %v1879
          %v1881 = vadd.f32 %v1880, 1.0
          %v1882 = vrcp.pop %v1881
          %v1883 = vmul.f32 1.0, %v1882
          %v1884 = vmul.f32 %v1875, %v1883
          %v1885 = vld [vmem:[%s16] sm:$0xff]
          %v1886 = vld [vmem:[%s16 + $0x8] sm:$0xff]
          %v1887 = vld [vmem:[%s16 + $0x10] sm:$0xff]
          %v1888 = vld [vmem:[%s16 + $0x18] sm:$0xff]
          %v1889 = vld [vmem:[%s16 + $0x20] sm:$0xff]
          %v1890 = vld [vmem:[%s16 + $0x28] sm:$0xff]
          %v1891 = vld [vmem:[%s16 + $0x30] sm:$0xff]
          %v1892 = vld [vmem:[%s16 + $0x38] sm:$0xff]
          %v1893 = vld [vmem:[%s17] sm:$0x1]
          %v1895 = vlaneseq
          %v1896 = vshrl.u32 %v1895, 7
          %v1897 = vsub.s32 0, %v1896
          %v1898 = vrot.slane %v1893, %v1897
          %vm1900 = vcmask 523264
          %v1902 = vsel %vm1900, %v1884, 0
          %1904 = vmatprep.subr.mxu0 0.0
          %1905 = vmatpush1.msra.mxu0 %v1885
          %1906 = vmatprep.subr.mxu0 0.0
          %1907 = vmatpush1.msra.mxu0 %v1886
          %1908 = vmatprep.subr.mxu0 0.0
          %1909 = vmatpush1.msra.mxu0 %v1887
          %1910 = vmatprep.subr.mxu0 0.0
          %1911 = vmatpush1.msra.mxu0 %v1888
          %1912 = vmatprep.subr.mxu0 0.0
          %1913 = vmatpush1.msra.mxu0 %v1889
          %1914 = vmatprep.subr.mxu0 0.0
          %1915 = vmatpush1.msra.mxu0 %v1890
          %1916 = vmatprep.subr.mxu0 0.0
          %1917 = vmatpush1.msra.mxu0 %v1891
          %1918 = vmatprep.subr.mxu0 0.0
          %1919 = vmatpush1.msra.mxu0 %v1892
          %1920 = vmatprep.subr.mxu0 0.0
          %1921 = vmatpush1.msra.mxu0 0.0
          %1922 = vmatprep.subr.mxu0 0.0
          %1923 = vmatpush1.msra.mxu0 0.0
          %1924 = vmatprep.subr.mxu0 0.0
          %1925 = vmatpush1.msra.mxu0 0.0
          %1926 = vmatprep.subr.mxu0 0.0
          %1927 = vmatpush1.msra.mxu0 0.0
          %1928 = vmatprep.subr.mxu0 0.0
          %1929 = vmatpush1.msra.mxu0 0.0
          %1930 = vmatprep.subr.mxu0 0.0
          %1931 = vmatpush1.msra.mxu0 0.0
          %1932 = vmatprep.subr.mxu0 0.0
          %1933 = vmatpush1.msra.mxu0 0.0
          %1934 = vmatprep.subr.mxu0 0.0
          %1935 = vmatpush1.msra.mxu0 0.0
          %1936 = vmatprep.subr.mxu0 0.0
          %1937 = vmatpush1.msra.mxu0 0.0
          %1938 = vmatprep.subr.mxu0 0.0
          %1939 = vmatpush1.msra.mxu0 0.0
          %1940 = vmatprep.subr.mxu0 0.0
          %1941 = vmatpush1.msra.mxu0 0.0
          %1942 = vmatprep.subr.mxu0 0.0
          %1943 = vmatpush1.msra.mxu0 0.0
          %1944 = vmatprep.subr.mxu0 0.0
          %1945 = vmatpush1.msra.mxu0 0.0
          %1946 = vmatprep.subr.mxu0 0.0
          %1947 = vmatpush1.msra.mxu0 0.0
          %1948 = vmatprep.subr.mxu0 0.0
          %1949 = vmatpush1.msra.mxu0 0.0
          %1950 = vmatprep.subr.mxu0 0.0
          %1951 = vmatpush1.msra.mxu0 0.0
          %1952 = vmatprep.subr.mxu0 0.0
          %1953 = vmatpush1.msra.mxu0 0.0
          %1954 = vmatprep.subr.mxu0 0.0
          %1955 = vmatpush1.msra.mxu0 0.0
          %1956 = vmatprep.subr.mxu0 0.0
          %1957 = vmatpush1.msra.mxu0 0.0
          %1958 = vmatprep.subr.mxu0 0.0
          %1959 = vmatpush1.msra.mxu0 0.0
          %1960 = vmatprep.subr.mxu0 0.0
          %1961 = vmatpush1.msra.mxu0 0.0
          %1962 = vmatprep.subr.mxu0 0.0
          %1963 = vmatpush1.msra.mxu0 0.0
          %1964 = vmatprep.subr.mxu0 0.0
          %1965 = vmatpush1.msra.mxu0 0.0
          %1966 = vmatprep.subr.mxu0 0.0
          %1967 = vmatpush1.msra.mxu0 0.0
          %1968 = vmatprep.mubr.f32.mxu0 0.0
          %1969 = vmatmul.mubr.f32.gmra.mrb[0].mxu0 %v1902
          %v1970 = vpop.f32.mrb[0].mxu0
          %v1971 = vadd.f32 %v1898, %v1970
          %v1972 = vpop.f32.mrb[0].mxu0
          %1973 = vdwg.mxu0
          %v1974 = vadd.f32 %v1764, %v1971
          %1975 = vst.msk [vmem:[%s616] sm:$0xff] %vm850, %v1974
        $region100: #{tpu_custom_call.1} parent=91 // pred_fallthru
          _
        %s1976 = sand.u32 %s453, 1
        %s1977 = scalar_lea.sflag [#allocation7], %s1976
        %s1978 = sand.u32 %s453, 1
        %s1979 = smul.addr %s1978, 8
        %s1980 = scalar_lea.vmem [#allocation6], %s1979
        // Predicated region
        $region101: #{tpu_custom_call.1} parent=91 // pred_check
          %p1981 = pneg %p463
        $region102: #{tpu_custom_call.1} parent=91 // pred_check_branch
          %1983 = sbr.rel (%p1981) target = $region104
        $region103: #{tpu_custom_call.1} parent=91 // pred_region
          %s1985 = ssub.s32 128, 128
          %1986 = vsyncadd %s1977, %s1985
          %s1987 = sadd.s32 %s38, %s37
          %s1988 = smul.addr %s1987, 128
          %s1989 = scalar_lea.hbm %s18, %s1988
          %s1991 = sshll.u32 %s1980, 4
          %s1992 = int_to_ptr.vmem [resolvable:$true] %s1991
          %1994 = dma.vmem_to_hbm [thread:$0]  %s1992, 128, %s1989, %s1977
        $region104: #{tpu_custom_call.1} parent=91 // pred_fallthru
          _
      $region92: #{tpu_custom_call.1} parent=5 // pred_fallthru
        _
      %p1995 = scmp.le.s32.totalorder 2, %s27
      // Predicated region
      $region105: #{tpu_custom_call.1} parent=5 // pred_check
        %p1996 = pneg %p1995
      $region106: #{tpu_custom_call.1} parent=5 // pred_check_branch
        %1998 = sbr.rel (%p1996) target = $region108
      $region107: #{tpu_custom_call.1} parent=5 // pred_region
        %s1999 = ssub.s32 %s27, 2
        // Predicated region
        $region109: #{tpu_custom_call.1} parent=107 // pred_check
          %p2000 = pneg %p469
        $region110: #{tpu_custom_call.1} parent=107 // pred_check_branch
          %2002 = sbr.rel (%p2000) target = $region112
        $region111: #{tpu_custom_call.1} parent=107 // pred_region
          %s2003 = sand.u32 %s454, 1
          %s2004 = scalar_lea.sflag [#allocation7], %s2003
          %s2005 = sand.u32 %s454, 1
          %s2006 = smul.addr %s2005, 8
          %s2007 = scalar_lea.vmem [#allocation6], %s2006
          %2008 = dma.done %s2004, 128
        $region112: #{tpu_custom_call.1} parent=107 // pred_fallthru
          _
      $region108: #{tpu_custom_call.1} parent=5 // pred_fallthru
        _
    $region6: #{tpu_custom_call.1} parent=1 // loop_footer
      %s31 = sadd.s32 1, %s27
    $region7: #{tpu_custom_call.1} parent=1 // loop_footer_branch
      %26 = sbr.rel target = $region3
    $region8: #{tpu_custom_call.1} parent=1 // loop_exit
      _
    %2009 = vsyncpa [#allocation7], 1
    %s2010 = scalar_lea.sflag [#allocation7], 1
    %2011 = vsyncpa %s2010, 1

</llo_original>
